<compile_context>
chip_gen: v6e
topology: v6e:2x2x1
jax: 0.10.0
libtpu: 0.0.40
codegen_flags: <defaults>
</compile_context>

<pallas_src>
import functools
import jax
import jax.numpy as jnp
from jax.experimental import pallas as pl
from jax.experimental.pallas import tpu as pltpu  # noqa: F401

# ----------------------------- configuration --------------------------------
N = 2                  # batch
HIMG = WIMG = 16       # raw image spatial size
HWIMG = HIMG * WIMG
C_IN = 8               # backbone output channels (last feature level)
H = W = 8              # backbone feature spatial size
HW = H * W
D = 32                 # hidden_dim (transformer.d_model); divisible by 32 for GroupNorm(32, D)
L_TXT = 8              # text sequence length (post-tokenizer)
H_BERT = 16            # BERT hidden size
MAX_TEXT_LEN = 16
Q = 8                  # num_queries
N_DEC = 2              # transformer.num_decoder_layers
GN_EPS = 1e-5
INV_SIG_EPS = 1e-3     # GroundingDINO inverse_sigmoid eps
TOPK_EVAL = 5          # select_box_nums_for_evaluation (small for the demo)

_F32 = jnp.float32


# ------------------------------- fused kernel --------------------------------
def _inverse_sigmoid(x):
    x = jnp.clip(x, 0.0, 1.0)
    x1 = jnp.maximum(x, INV_SIG_EPS)
    x2 = jnp.maximum(1.0 - x, INV_SIG_EPS)
    return jnp.log(x1 / x2)


def grounding_dino_fused_kernel(
    # preprocess_image
    img_ref, mean_ref, inv_std_ref,
    # input_proj (1x1 conv + GroupNorm(32, D))
    feat_ref, proj_w_ref, proj_b_ref, gamma_ref, beta_ref,
    # feat_map (Linear H_BERT -> D)
    bert_ref, fm_w_ref, fm_b_ref,
    # bbox_embed MLP + ContrastiveEmbed
    hs_ref, refpts_ref, w1_ref, b1_ref, w2_ref, b2_ref, w3_ref, b3_ref,
    mask_ref,
    # outputs
    img_out_ref, srcs_out_ref, etext_out_ref, boxes_out_ref, cls_out_ref):
    # ---- 1) normalizer: (x - mean) * (1/std); img is (N, 3, HWIMG) lane-dense.
    img_out_ref[...] = (img_ref[...] - mean_ref[...]) * inv_std_ref[...]

    # ---- 2) input_proj: 1x1 Conv2d == channel matmul over the whole batch.
    # feat: (N*HW, C_IN) @ (C_IN, D) -> (N*HW, D) in one MXU pass.
    y = jnp.dot(feat_ref[...], proj_w_ref[...],
                preferred_element_type=_F32) + proj_b_ref[...]
    # GroupNorm(32, D) with D == 32 -> one channel per group: per-(sample,
    # channel) statistics over the spatial extent only (nn.GroupNorm semantics).
    for n in range(N):                                   # static unroll, N=2
        yn = y[n * HW:(n + 1) * HW, :]                   # (HW, D)
        mu = jnp.mean(yn, axis=0, keepdims=True)
        var = jnp.mean((yn - mu) ** 2, axis=0, keepdims=True)
        yn = (yn - mu) * jax.lax.rsqrt(var + GN_EPS)
        srcs_out_ref[n * HW:(n + 1) * HW, :] = yn * gamma_ref[...] + beta_ref[...]

    # ---- 3) feat_map: (N*L, H_BERT) @ (H_BERT, D) -> (N*L, D), one matmul.
    etext = jnp.dot(bert_ref[...], fm_w_ref[...],
                    preferred_element_type=_F32) + fm_b_ref[...]
    etext_out_ref[...] = etext

    # ---- 4) bbox_embed: MLP(D, D, 4, 3) batched over (N_DEC*N*Q, D) = (32, 32).
    hs = hs_ref[...]                                                   # (32, D)
    h1 = jnp.maximum(jnp.dot(hs, w1_ref[...],
                             preferred_element_type=_F32) + b1_ref[...], 0.0)
    h2 = jnp.maximum(jnp.dot(h1, w2_ref[...],
                             preferred_element_type=_F32) + b2_ref[...], 0.0)
    delta = jnp.dot(h2, w3_ref[...],
                    preferred_element_type=_F32) + b3_ref[...]         # (32, 4)
    boxes_out_ref[...] = jax.nn.sigmoid(delta + _inverse_sigmoid(refpts_ref[...]))

    # ---- 5) ContrastiveEmbed: one batched matmul against ALL samples' text,
    # then per-(layer, sample) block select + token mask; -inf padding to
    # max_text_len is written directly in-kernel (no JAX-side concat).
    big = jax.lax.dot_general(hs, etext, (((1,), (1,)), ((), ())),
                              preferred_element_type=_F32)   # (N_DEC*N*Q, N*L)
    mask = mask_ref[...]                                     # (N, L) float
    cls_out_ref[...] = jnp.full((N_DEC * N * Q, MAX_TEXT_LEN), -jnp.inf, _F32)
    for l in range(N_DEC):                                   # static unroll (4 iters)
        for n in range(N):
            r = l * N + n
            block = big[r * Q:(r + 1) * Q, n * L_TXT:(n + 1) * L_TXT]   # (Q, L)
            block = jnp.where(mask[n:n + 1, :] > 0.5, block, -jnp.inf)
            cls_out_ref[r * Q:(r + 1) * Q, 0:L_TXT] = block


# ------------------------------ parameter init --------------------------------
def _xavier_uniform(key, fan_in, fan_out):
    bound = (6.0 / (fan_in + fan_out)) ** 0.5
    return jax.random.uniform(key, (fan_in, fan_out), _F32, -bound, bound)


def _torch_default(key, fan_in, shape):
    bound = 1.0 / (fan_in ** 0.5)
    return jax.random.uniform(key, shape, _F32, -bound, bound)


def init_params(key):
    k = jax.random.split(key, 8)
    # Module's own default signature: pixel_mean == pixel_std == [123.675, 116.28, 103.53].
    pixel_mean = jnp.array([[123.675], [116.28], [103.53]], _F32)      # (3, 1)
    pixel_std = jnp.array([[123.675], [116.28], [103.53]], _F32)       # (3, 1)
    params = {
        # feat_map: nn.Linear(bert_hidden, hidden_dim); xavier weight, zero bias
        "feat_map_w": _xavier_uniform(k[0], H_BERT, D),
        "feat_map_b": jnp.zeros((1, D), _F32),
        # input_proj: Conv2d(C_IN, D, 1) xavier / zero bias + GroupNorm(32, D)
        "proj_w": _xavier_uniform(k[1], C_IN, D),
        "proj_b": jnp.zeros((1, D), _F32),
        "gn_gamma": jnp.ones((1, D), _F32),
        "gn_beta": jnp.zeros((1, D), _F32),
        # bbox_embed: MLP(D, D, 4, 3); last layer weight/bias zero per __init__
        "bbox_w1": _torch_default(k[2], D, (D, D)),
        "bbox_b1": _torch_default(k[3], D, (1, D)),
        "bbox_w2": _torch_default(k[4], D, (D, D)),
        "bbox_b2": _torch_default(k[5], D, (1, D)),
        "bbox_w3": jnp.zeros((D, 4), _F32),
        "bbox_b3": jnp.zeros((1, 4), _F32),
        # normalizer constants; reciprocal precomputed (multiply, not divide, in-kernel)
        "pixel_mean": pixel_mean,
        "pixel_inv_std": 1.0 / pixel_std,
    }
    return params


# ------------------------------ forward (glue) ---------------------------------
@functools.partial(jax.jit, static_argnames=())
def grounding_dino_forward(params, images, backbone_feat, bert_last_hidden,
                           text_token_mask, hs, reference):
    # TODO(synk): backbone / BERT / deformable transformer are external submodules;
    # their outputs are provided as synthetic inputs (backbone_feat,
    # bert_last_hidden, hs, reference).
    images_chw = images.reshape(N, 3, HWIMG)                 # channels-second, lane-dense
    feat_flat = backbone_feat.reshape(N * HW, C_IN)
    bert_flat = bert_last_hidden.reshape(N * L_TXT, H_BERT)
    hs_flat = hs.reshape(N_DEC * N * Q, D)
    ref_flat = reference[:-1].reshape(N_DEC * N * Q, 4)
    mask_f = text_token_mask.astype(_F32)

    # Single fused pallas_call, grid=() : every operand is a whole-array VMEM
    # block (total < 100 KB), so there is no per-grid-step or per-call DMA churn
    # and all weights are staged exactly once.
    (img_norm, srcs_flat, etext_flat, coords_flat, cls_flat) = pl.pallas_call(
        grounding_dino_fused_kernel,
        out_shape=(
            jax.ShapeDtypeStruct((N, 3, HWIMG), _F32),                 # normalized images
            jax.ShapeDtypeStruct((N * HW, D), _F32),                   # srcs (input_proj)
            jax.ShapeDtypeStruct((N * L_TXT, D), _F32),                # encoded_text
            jax.ShapeDtypeStruct((N_DEC * N * Q, 4), _F32),            # outputs_coord
            jax.ShapeDtypeStruct((N_DEC * N * Q, MAX_TEXT_LEN), _F32), # outputs_class (padded)
        ),
    )(images_chw, params["pixel_mean"], params["pixel_inv_std"],
      feat_flat, params["proj_w"], params["proj_b"],
      params["gn_gamma"], params["gn_beta"],
      bert_flat, params["feat_map_w"], params["feat_map_b"],
      hs_flat, ref_flat,
      params["bbox_w1"], params["bbox_b1"],
      params["bbox_w2"], params["bbox_b2"],
      params["bbox_w3"], params["bbox_b3"],
      mask_f)

    # Contiguous, free reshapes back to the logical PyTorch shapes.
    outputs_coord = coords_flat.reshape(N_DEC, N, Q, 4)
    outputs_class = cls_flat.reshape(N_DEC, N, Q, MAX_TEXT_LEN)
    srcs = srcs_flat.reshape(N, HW, D)
    encoded_text = etext_flat.reshape(N, L_TXT, D)
    # TODO(synk): use_prompt MoeAdapter branch not implemented (use_prompt=False default).
    # TODO(synk): recover_to_cls_logits (category->token aggregation) needs the
    # tokenizer's cate_to_token_mask_list; not implemented.
    # TODO(synk): img_norm would feed the external backbone; returned for inspection.

    out = {"pred_logits": outputs_class[-1], "pred_boxes": outputs_coord[-1],
           "srcs": srcs, "encoded_text": encoded_text,
           "images_normalized": img_norm.reshape(N, 3, HIMG, WIMG)}

    # ---- eval-path inference (glue; top_k has no Pallas equivalent) ----
    prob = jax.nn.sigmoid(outputs_class[-1].reshape(N, Q * MAX_TEXT_LEN))
    topk_values, topk_indexes = jax.lax.top_k(prob, TOPK_EVAL)
    topk_boxes = topk_indexes // MAX_TEXT_LEN
    labels = topk_indexes % MAX_TEXT_LEN
    gather_idx = jnp.broadcast_to(topk_boxes[..., None], (N, TOPK_EVAL, 4))
    boxes_cxcywh = jnp.take_along_axis(out["pred_boxes"], gather_idx, axis=1)
    cx, cy, w, h = jnp.split(boxes_cxcywh, 4, axis=-1)
    boxes_xyxy = jnp.concatenate(
        [cx - 0.5 * w, cy - 0.5 * h, cx + 0.5 * w, cy + 0.5 * h], axis=-1)
    scale = jnp.array([WIMG, HIMG, WIMG, HIMG], _F32)
    out["scores"] = topk_values
    out["pred_classes"] = labels
    out["boxes_xyxy"] = boxes_xyxy * scale
    return out


# ---------------------------------- main ---------------------------------------
if __name__ == "__main__":
    key = jax.random.PRNGKey(0)
    k = jax.random.split(key, 8)

    params = init_params(k[0])

    # Deterministic synthetic inputs standing in for external submodule outputs.
    images = jax.random.uniform(k[1], (N, 3, HIMG, WIMG), _F32) * 255.0
    backbone_feat = jax.random.normal(k[2], (N, H, W, C_IN), _F32)
    bert_last_hidden = jax.random.normal(k[3], (N, L_TXT, H_BERT), _F32)
    text_token_mask = jax.random.uniform(k[4], (N, L_TXT)) > 0.2
    hs = jax.random.normal(k[5], (N_DEC, N, Q, D), _F32)
    reference = jax.random.uniform(k[6], (N_DEC + 1, N, Q, 4), _F32,
                                   minval=0.05, maxval=0.95)

    out = grounding_dino_forward(params, images, backbone_feat, bert_last_hidden,
                                 text_token_mask, hs, reference)
    jax.block_until_ready(out)

    assert out["pred_logits"].shape == (N, Q, MAX_TEXT_LEN)
    assert out["pred_boxes"].shape == (N, Q, 4)
    assert out["boxes_xyxy"].shape == (N, TOPK_EVAL, 4)
    assert out["images_normalized"].shape == (N, 3, HIMG, WIMG)
    assert bool(jnp.all(jnp.isfinite(out["pred_boxes"])))
    assert bool(jnp.all(jnp.isfinite(out["images_normalized"])))
    print("KERNEL_OK")
</pallas_src>

<mosaic_0001>
module attributes {stable_mosaic.version = 11 : i64} {
  func.func @grounding_dino_fused_kernel(%arg0: memref<2x3x256xf32, #tpu.memory_space<vmem>>, %arg1: memref<3x1xf32, #tpu.memory_space<vmem>>, %arg2: memref<3x1xf32, #tpu.memory_space<vmem>>, %arg3: memref<128x8xf32, #tpu.memory_space<vmem>>, %arg4: memref<8x32xf32, #tpu.memory_space<vmem>>, %arg5: memref<1x32xf32, #tpu.memory_space<vmem>>, %arg6: memref<1x32xf32, #tpu.memory_space<vmem>>, %arg7: memref<1x32xf32, #tpu.memory_space<vmem>>, %arg8: memref<16x16xf32, #tpu.memory_space<vmem>>, %arg9: memref<16x32xf32, #tpu.memory_space<vmem>>, %arg10: memref<1x32xf32, #tpu.memory_space<vmem>>, %arg11: memref<32x32xf32, #tpu.memory_space<vmem>>, %arg12: memref<32x4xf32, #tpu.memory_space<vmem>>, %arg13: memref<32x32xf32, #tpu.memory_space<vmem>>, %arg14: memref<1x32xf32, #tpu.memory_space<vmem>>, %arg15: memref<32x32xf32, #tpu.memory_space<vmem>>, %arg16: memref<1x32xf32, #tpu.memory_space<vmem>>, %arg17: memref<32x4xf32, #tpu.memory_space<vmem>>, %arg18: memref<1x4xf32, #tpu.memory_space<vmem>>, %arg19: memref<2x8xf32, #tpu.memory_space<vmem>>, %arg20: memref<2x3x256xf32, #tpu.memory_space<vmem>>, %arg21: memref<128x32xf32, #tpu.memory_space<vmem>>, %arg22: memref<16x32xf32, #tpu.memory_space<vmem>>, %arg23: memref<32x4xf32, #tpu.memory_space<vmem>>, %arg24: memref<32x16xf32, #tpu.memory_space<vmem>>) attributes {dimension_semantics = [], scalar_prefetch = 0 : i64, scratch_operands = 0 : i64, tpu.core_type = #tpu.core_type<tc>} {
    %c0 = arith.constant 0 : index
    %c0_0 = arith.constant 0 : index
    %c0_1 = arith.constant 0 : index
    %0 = vector.load %arg0[%c0, %c0_0, %c0_1] : memref<2x3x256xf32, #tpu.memory_space<vmem>>, vector<2x3x256xf32>
    %c0_2 = arith.constant 0 : index
    %c0_3 = arith.constant 0 : index
    %1 = vector.load %arg1[%c0_2, %c0_3] : memref<3x1xf32, #tpu.memory_space<vmem>>, vector<3x1xf32>
    %2 = vector.shape_cast %1 : vector<3x1xf32> to vector<1x3x1xf32>
    %3 = vector.broadcast %2 : vector<1x3x1xf32> to vector<2x3x256xf32>
    %4 = arith.subf %0, %3 : vector<2x3x256xf32>
    %c0_4 = arith.constant 0 : index
    %c0_5 = arith.constant 0 : index
    %5 = vector.load %arg2[%c0_4, %c0_5] : memref<3x1xf32, #tpu.memory_space<vmem>>, vector<3x1xf32>
    %6 = vector.shape_cast %5 : vector<3x1xf32> to vector<1x3x1xf32>
    %7 = vector.broadcast %6 : vector<1x3x1xf32> to vector<2x3x256xf32>
    %8 = arith.mulf %4, %7 : vector<2x3x256xf32>
    %c0_6 = arith.constant 0 : index
    %c0_7 = arith.constant 0 : index
    %c0_8 = arith.constant 0 : index
    %9 = vector.load %arg20[%c0_6, %c0_7, %c0_8] : memref<2x3x256xf32, #tpu.memory_space<vmem>>, vector<2x3x256xf32>
    tpu.vector_store %arg20[%c0_6, %c0_7, %c0_8], %8 {strides = array<i32>} : memref<2x3x256xf32, #tpu.memory_space<vmem>>, vector<2x3x256xf32>,
    %c0_9 = arith.constant 0 : index
    %c0_10 = arith.constant 0 : index
    %10 = vector.load %arg3[%c0_9, %c0_10] : memref<128x8xf32, #tpu.memory_space<vmem>>, vector<128x8xf32>
    %c0_11 = arith.constant 0 : index
    %c0_12 = arith.constant 0 : index
    %11 = vector.load %arg4[%c0_11, %c0_12] : memref<8x32xf32, #tpu.memory_space<vmem>>, vector<8x32xf32>
    %cst = arith.constant dense<0.000000e+00> : vector<128x32xf32>
    %12 = tpu.matmul %10, %11, %cst {dimension_numbers = #tpu.dot_dimension_numbers<[1], [0], [0], [1], [0, 0, 1, 1], [], []>} : vector<128x8xf32>, vector<8x32xf32>, vector<128x32xf32> -> vector<128x32xf32>
    %c0_13 = arith.constant 0 : index
    %c0_14 = arith.constant 0 : index
    %13 = vector.load %arg5[%c0_13, %c0_14] : memref<1x32xf32, #tpu.memory_space<vmem>>, vector<1x32xf32>
    %14 = vector.broadcast %13 : vector<1x32xf32> to vector<128x32xf32>
    %15 = arith.addf %12, %14 : vector<128x32xf32>
    %16 = vector.extract_strided_slice %15 {offsets = [0, 0], sizes = [64, 32], strides = [1, 1]} : vector<128x32xf32> to vector<64x32xf32>
    %cst_15 = arith.constant dense<0.000000e+00> : vector<32xf32>
    %17 = vector.multi_reduction <add>, %16, %cst_15 [0] : vector<64x32xf32> to vector<32xf32>
    %18 = vector.shape_cast %17 : vector<32xf32> to vector<1x32xf32>
    %cst_16 = arith.constant 6.400000e+01 : f32
    %19 = vector.broadcast %cst_16 : f32 to vector<1x32xf32>
    %20 = arith.divf %18, %19 : vector<1x32xf32>
    %21 = vector.broadcast %20 : vector<1x32xf32> to vector<64x32xf32>
    %22 = arith.subf %16, %21 : vector<64x32xf32>
    %23 = arith.mulf %22, %22 : vector<64x32xf32>
    %cst_17 = arith.constant dense<0.000000e+00> : vector<32xf32>
    %24 = vector.multi_reduction <add>, %23, %cst_17 [0] : vector<64x32xf32> to vector<32xf32>
    %25 = vector.shape_cast %24 : vector<32xf32> to vector<1x32xf32>
    %cst_18 = arith.constant 6.400000e+01 : f32
    %26 = vector.broadcast %cst_18 : f32 to vector<1x32xf32>
    %27 = arith.divf %25, %26 : vector<1x32xf32>
    %28 = vector.broadcast %20 : vector<1x32xf32> to vector<64x32xf32>
    %29 = arith.subf %16, %28 : vector<64x32xf32>
    %cst_19 = arith.constant 9.99999974E-6 : f32
    %30 = vector.broadcast %cst_19 : f32 to vector<1x32xf32>
    %31 = arith.addf %27, %30 : vector<1x32xf32>
    %32 = math.rsqrt %31 : vector<1x32xf32>
    %33 = vector.broadcast %32 : vector<1x32xf32> to vector<64x32xf32>
    %34 = arith.mulf %29, %33 : vector<64x32xf32>
    %c0_20 = arith.constant 0 : index
    %c0_21 = arith.constant 0 : index
    %35 = vector.load %arg6[%c0_20, %c0_21] : memref<1x32xf32, #tpu.memory_space<vmem>>, vector<1x32xf32>
    %36 = vector.broadcast %35 : vector<1x32xf32> to vector<64x32xf32>
    %37 = arith.mulf %34, %36 : vector<64x32xf32>
    %c0_22 = arith.constant 0 : index
    %c0_23 = arith.constant 0 : index
    %38 = vector.load %arg7[%c0_22, %c0_23] : memref<1x32xf32, #tpu.memory_space<vmem>>, vector<1x32xf32>
    %39 = vector.broadcast %38 : vector<1x32xf32> to vector<64x32xf32>
    %40 = arith.addf %37, %39 : vector<64x32xf32>
    %c0_24 = arith.constant 0 : index
    %c0_25 = arith.constant 0 : index
    %41 = vector.load %arg21[%c0_24, %c0_25] : memref<128x32xf32, #tpu.memory_space<vmem>>, vector<64x32xf32>
    tpu.vector_store %arg21[%c0_24, %c0_25], %40 {strides = array<i32>} : memref<128x32xf32, #tpu.memory_space<vmem>>, vector<64x32xf32>,
    %42 = vector.extract_strided_slice %15 {offsets = [64, 0], sizes = [64, 32], strides = [1, 1]} : vector<128x32xf32> to vector<64x32xf32>
    %cst_26 = arith.constant dense<0.000000e+00> : vector<32xf32>
    %43 = vector.multi_reduction <add>, %42, %cst_26 [0] : vector<64x32xf32> to vector<32xf32>
    %44 = vector.shape_cast %43 : vector<32xf32> to vector<1x32xf32>
    %cst_27 = arith.constant 6.400000e+01 : f32
    %45 = vector.broadcast %cst_27 : f32 to vector<1x32xf32>
    %46 = arith.divf %44, %45 : vector<1x32xf32>
    %47 = vector.broadcast %46 : vector<1x32xf32> to vector<64x32xf32>
    %48 = arith.subf %42, %47 : vector<64x32xf32>
    %49 = arith.mulf %48, %48 : vector<64x32xf32>
    %cst_28 = arith.constant dense<0.000000e+00> : vector<32xf32>
    %50 = vector.multi_reduction <add>, %49, %cst_28 [0] : vector<64x32xf32> to vector<32xf32>
    %51 = vector.shape_cast %50 : vector<32xf32> to vector<1x32xf32>
    %cst_29 = arith.constant 6.400000e+01 : f32
    %52 = vector.broadcast %cst_29 : f32 to vector<1x32xf32>
    %53 = arith.divf %51, %52 : vector<1x32xf32>
    %54 = vector.broadcast %46 : vector<1x32xf32> to vector<64x32xf32>
    %55 = arith.subf %42, %54 : vector<64x32xf32>
    %cst_30 = arith.constant 9.99999974E-6 : f32
    %56 = vector.broadcast %cst_30 : f32 to vector<1x32xf32>
    %57 = arith.addf %53, %56 : vector<1x32xf32>
    %58 = math.rsqrt %57 : vector<1x32xf32>
    %59 = vector.broadcast %58 : vector<1x32xf32> to vector<64x32xf32>
    %60 = arith.mulf %55, %59 : vector<64x32xf32>
    %c0_31 = arith.constant 0 : index
    %c0_32 = arith.constant 0 : index
    %61 = vector.load %arg6[%c0_31, %c0_32] : memref<1x32xf32, #tpu.memory_space<vmem>>, vector<1x32xf32>
    %62 = vector.broadcast %61 : vector<1x32xf32> to vector<64x32xf32>
    %63 = arith.mulf %60, %62 : vector<64x32xf32>
    %c0_33 = arith.constant 0 : index
    %c0_34 = arith.constant 0 : index
    %64 = vector.load %arg7[%c0_33, %c0_34] : memref<1x32xf32, #tpu.memory_space<vmem>>, vector<1x32xf32>
    %65 = vector.broadcast %64 : vector<1x32xf32> to vector<64x32xf32>
    %66 = arith.addf %63, %65 : vector<64x32xf32>
    %c64 = arith.constant 64 : index
    %c0_35 = arith.constant 0 : index
    %67 = vector.load %arg21[%c64, %c0_35] : memref<128x32xf32, #tpu.memory_space<vmem>>, vector<64x32xf32>
    tpu.vector_store %arg21[%c64, %c0_35], %66 {strides = array<i32>} : memref<128x32xf32, #tpu.memory_space<vmem>>, vector<64x32xf32>,
    %c0_36 = arith.constant 0 : index
    %c0_37 = arith.constant 0 : index
    %68 = vector.load %arg8[%c0_36, %c0_37] : memref<16x16xf32, #tpu.memory_space<vmem>>, vector<16x16xf32>
    %c0_38 = arith.constant 0 : index
    %c0_39 = arith.constant 0 : index
    %69 = vector.load %arg9[%c0_38, %c0_39] : memref<16x32xf32, #tpu.memory_space<vmem>>, vector<16x32xf32>
    %cst_40 = arith.constant dense<0.000000e+00> : vector<16x32xf32>
    %70 = tpu.matmul %68, %69, %cst_40 {dimension_numbers = #tpu.dot_dimension_numbers<[1], [0], [0], [1], [0, 0, 1, 1], [], []>} : vector<16x16xf32>, vector<16x32xf32>, vector<16x32xf32> -> vector<16x32xf32>
    %c0_41 = arith.constant 0 : index
    %c0_42 = arith.constant 0 : index
    %71 = vector.load %arg10[%c0_41, %c0_42] : memref<1x32xf32, #tpu.memory_space<vmem>>, vector<1x32xf32>
    %72 = vector.broadcast %71 : vector<1x32xf32> to vector<16x32xf32>
    %73 = arith.addf %70, %72 : vector<16x32xf32>
    %c0_43 = arith.constant 0 : index
    %c0_44 = arith.constant 0 : index
    %74 = vector.load %arg22[%c0_43, %c0_44] : memref<16x32xf32, #tpu.memory_space<vmem>>, vector<16x32xf32>
    tpu.vector_store %arg22[%c0_43, %c0_44], %73 {strides = array<i32>} : memref<16x32xf32, #tpu.memory_space<vmem>>, vector<16x32xf32>,
    %c0_45 = arith.constant 0 : index
    %c0_46 = arith.constant 0 : index
    %75 = vector.load %arg11[%c0_45, %c0_46] : memref<32x32xf32, #tpu.memory_space<vmem>>, vector<32x32xf32>
    %c0_47 = arith.constant 0 : index
    %c0_48 = arith.constant 0 : index
    %76 = vector.load %arg13[%c0_47, %c0_48] : memref<32x32xf32, #tpu.memory_space<vmem>>, vector<32x32xf32>
    %cst_49 = arith.constant dense<0.000000e+00> : vector<32x32xf32>
    %77 = tpu.matmul %75, %76, %cst_49 {dimension_numbers = #tpu.dot_dimension_numbers<[1], [0], [0], [1], [0, 0, 1, 1], [], []>} : vector<32x32xf32>, vector<32x32xf32>, vector<32x32xf32> -> vector<32x32xf32>
    %c0_50 = arith.constant 0 : index
    %c0_51 = arith.constant 0 : index
    %78 = vector.load %arg14[%c0_50, %c0_51] : memref<1x32xf32, #tpu.memory_space<vmem>>, vector<1x32xf32>
    %79 = vector.broadcast %78 : vector<1x32xf32> to vector<32x32xf32>
    %80 = arith.addf %77, %79 : vector<32x32xf32>
    %cst_52 = arith.constant 0.000000e+00 : f32
    %81 = vector.broadcast %cst_52 : f32 to vector<32x32xf32>
    %82 = arith.maximumf %80, %81 : vector<32x32xf32>
    %c0_53 = arith.constant 0 : index
    %c0_54 = arith.constant 0 : index
    %83 = vector.load %arg15[%c0_53, %c0_54] : memref<32x32xf32, #tpu.memory_space<vmem>>, vector<32x32xf32>
    %cst_55 = arith.constant dense<0.000000e+00> : vector<32x32xf32>
    %84 = tpu.matmul %82, %83, %cst_55 {dimension_numbers = #tpu.dot_dimension_numbers<[1], [0], [0], [1], [0, 0, 1, 1], [], []>} : vector<32x32xf32>, vector<32x32xf32>, vector<32x32xf32> -> vector<32x32xf32>
    %c0_56 = arith.constant 0 : index
    %c0_57 = arith.constant 0 : index
    %85 = vector.load %arg16[%c0_56, %c0_57] : memref<1x32xf32, #tpu.memory_space<vmem>>, vector<1x32xf32>
    %86 = vector.broadcast %85 : vector<1x32xf32> to vector<32x32xf32>
    %87 = arith.addf %84, %86 : vector<32x32xf32>
    %cst_58 = arith.constant 0.000000e+00 : f32
    %88 = vector.broadcast %cst_58 : f32 to vector<32x32xf32>
    %89 = arith.maximumf %87, %88 : vector<32x32xf32>
    %c0_59 = arith.constant 0 : index
    %c0_60 = arith.constant 0 : index
    %90 = vector.load %arg17[%c0_59, %c0_60] : memref<32x4xf32, #tpu.memory_space<vmem>>, vector<32x4xf32>
    %cst_61 = arith.constant dense<0.000000e+00> : vector<32x4xf32>
    %91 = tpu.matmul %89, %90, %cst_61 {dimension_numbers = #tpu.dot_dimension_numbers<[1], [0], [0], [1], [0, 0, 1, 1], [], []>} : vector<32x32xf32>, vector<32x4xf32>, vector<32x4xf32> -> vector<32x4xf32>
    %c0_62 = arith.constant 0 : index
    %c0_63 = arith.constant 0 : index
    %92 = vector.load %arg18[%c0_62, %c0_63] : memref<1x4xf32, #tpu.memory_space<vmem>>, vector<1x4xf32>
    %93 = vector.broadcast %92 : vector<1x4xf32> to vector<32x4xf32>
    %94 = arith.addf %91, %93 : vector<32x4xf32>
    %c0_64 = arith.constant 0 : index
    %c0_65 = arith.constant 0 : index
    %95 = vector.load %arg12[%c0_64, %c0_65] : memref<32x4xf32, #tpu.memory_space<vmem>>, vector<32x4xf32>
    %cst_66 = arith.constant 0.000000e+00 : f32
    %cst_67 = arith.constant 1.000000e+00 : f32
    %96 = vector.broadcast %cst_66 : f32 to vector<32x4xf32>
    %97 = arith.maximumf %96, %95 : vector<32x4xf32>
    %98 = vector.broadcast %cst_67 : f32 to vector<32x4xf32>
    %99 = arith.minimumf %98, %97 : vector<32x4xf32>
    %cst_68 = arith.constant 1.000000e-03 : f32
    %100 = vector.broadcast %cst_68 : f32 to vector<32x4xf32>
    %101 = arith.maximumf %99, %100 : vector<32x4xf32>
    %cst_69 = arith.constant 1.000000e+00 : f32
    %102 = vector.broadcast %cst_69 : f32 to vector<32x4xf32>
    %103 = arith.subf %102, %99 : vector<32x4xf32>
    %cst_70 = arith.constant 1.000000e-03 : f32
    %104 = vector.broadcast %cst_70 : f32 to vector<32x4xf32>
    %105 = arith.maximumf %103, %104 : vector<32x4xf32>
    %106 = arith.divf %101, %105 : vector<32x4xf32>
    %107 = math.log %106 : vector<32x4xf32>
    %108 = arith.addf %94, %107 : vector<32x4xf32>
    %109 = arith.negf %108 : vector<32x4xf32>
    %110 = math.exp %109 : vector<32x4xf32>
    %cst_71 = arith.constant 1.000000e+00 : f32
    %111 = vector.broadcast %cst_71 : f32 to vector<32x4xf32>
    %112 = arith.addf %111, %110 : vector<32x4xf32>
    %113 = arith.divf %111, %112 : vector<32x4xf32>
    %c0_72 = arith.constant 0 : index
    %c0_73 = arith.constant 0 : index
    %114 = vector.load %arg23[%c0_72, %c0_73] : memref<32x4xf32, #tpu.memory_space<vmem>>, vector<32x4xf32>
    tpu.vector_store %arg23[%c0_72, %c0_73], %113 {strides = array<i32>} : memref<32x4xf32, #tpu.memory_space<vmem>>, vector<32x4xf32>,
    %cst_74 = arith.constant dense<0.000000e+00> : vector<32x16xf32>
    %115 = tpu.matmul %75, %73, %cst_74 {dimension_numbers = #tpu.dot_dimension_numbers<[1], [1], [0], [0], [0, 0, 1, 0], [], []>} : vector<32x32xf32>, vector<16x32xf32>, vector<32x16xf32> -> vector<32x16xf32>
    %c0_75 = arith.constant 0 : index
    %c0_76 = arith.constant 0 : index
    %116 = vector.load %arg19[%c0_75, %c0_76] : memref<2x8xf32, #tpu.memory_space<vmem>>, vector<2x8xf32>
    %cst_77 = arith.constant 0xFF800000 : f32
    %117 = vector.broadcast %cst_77 : f32 to vector<32x16xf32>
    %c0_78 = arith.constant 0 : index
    %c0_79 = arith.constant 0 : index
    %118 = vector.load %arg24[%c0_78, %c0_79] : memref<32x16xf32, #tpu.memory_space<vmem>>, vector<32x16xf32>
    tpu.vector_store %arg24[%c0_78, %c0_79], %117 {strides = array<i32>} : memref<32x16xf32, #tpu.memory_space<vmem>>, vector<32x16xf32>,
    %119 = vector.extract_strided_slice %115 {offsets = [0, 0], sizes = [8, 8], strides = [1, 1]} : vector<32x16xf32> to vector<8x8xf32>
    %120 = vector.extract_strided_slice %116 {offsets = [0, 0], sizes = [1, 8], strides = [1, 1]} : vector<2x8xf32> to vector<1x8xf32>
    %cst_80 = arith.constant 5.000000e-01 : f32
    %121 = vector.broadcast %cst_80 : f32 to vector<1x8xf32>
    %122 = arith.cmpf ogt, %120, %121 : vector<1x8xf32>
    %cst_81 = arith.constant 0xFF800000 : f32
    %123 = vector.shape_cast %122 : vector<1x8xi1> to vector<1x8xi1>
    %124 = vector.broadcast %123 : vector<1x8xi1> to vector<8x8xi1>
    %125 = vector.broadcast %cst_81 : f32 to vector<8x8xf32>
    %126 = arith.select %124, %119, %125 : vector<8x8xi1>, vector<8x8xf32>
    %c0_82 = arith.constant 0 : index
    %c0_83 = arith.constant 0 : index
    %127 = vector.load %arg24[%c0_82, %c0_83] : memref<32x16xf32, #tpu.memory_space<vmem>>, vector<8x8xf32>
    tpu.vector_store %arg24[%c0_82, %c0_83], %126 {strides = array<i32>} : memref<32x16xf32, #tpu.memory_space<vmem>>, vector<8x8xf32>,
    %128 = vector.extract_strided_slice %115 {offsets = [8, 8], sizes = [8, 8], strides = [1, 1]} : vector<32x16xf32> to vector<8x8xf32>
    %129 = vector.extract_strided_slice %116 {offsets = [1, 0], sizes = [1, 8], strides = [1, 1]} : vector<2x8xf32> to vector<1x8xf32>
    %cst_84 = arith.constant 5.000000e-01 : f32
    %130 = vector.broadcast %cst_84 : f32 to vector<1x8xf32>
    %131 = arith.cmpf ogt, %129, %130 : vector<1x8xf32>
    %cst_85 = arith.constant 0xFF800000 : f32
    %132 = vector.shape_cast %131 : vector<1x8xi1> to vector<1x8xi1>
    %133 = vector.broadcast %132 : vector<1x8xi1> to vector<8x8xi1>
    %134 = vector.broadcast %cst_85 : f32 to vector<8x8xf32>
    %135 = arith.select %133, %128, %134 : vector<8x8xi1>, vector<8x8xf32>
    %c8 = arith.constant 8 : index
    %c0_86 = arith.constant 0 : index
    %136 = vector.load %arg24[%c8, %c0_86] : memref<32x16xf32, #tpu.memory_space<vmem>>, vector<8x8xf32>
    tpu.vector_store %arg24[%c8, %c0_86], %135 {strides = array<i32>} : memref<32x16xf32, #tpu.memory_space<vmem>>, vector<8x8xf32>,
    %137 = vector.extract_strided_slice %115 {offsets = [16, 0], sizes = [8, 8], strides = [1, 1]} : vector<32x16xf32> to vector<8x8xf32>
    %138 = vector.extract_strided_slice %116 {offsets = [0, 0], sizes = [1, 8], strides = [1, 1]} : vector<2x8xf32> to vector<1x8xf32>
    %cst_87 = arith.constant 5.000000e-01 : f32
    %139 = vector.broadcast %cst_87 : f32 to vector<1x8xf32>
    %140 = arith.cmpf ogt, %138, %139 : vector<1x8xf32>
    %cst_88 = arith.constant 0xFF800000 : f32
    %141 = vector.shape_cast %140 : vector<1x8xi1> to vector<1x8xi1>
    %142 = vector.broadcast %141 : vector<1x8xi1> to vector<8x8xi1>
    %143 = vector.broadcast %cst_88 : f32 to vector<8x8xf32>
    %144 = arith.select %142, %137, %143 : vector<8x8xi1>, vector<8x8xf32>
    %c16 = arith.constant 16 : index
    %c0_89 = arith.constant 0 : index
    %145 = vector.load %arg24[%c16, %c0_89] : memref<32x16xf32, #tpu.memory_space<vmem>>, vector<8x8xf32>
    tpu.vector_store %arg24[%c16, %c0_89], %144 {strides = array<i32>} : memref<32x16xf32, #tpu.memory_space<vmem>>, vector<8x8xf32>,
    %146 = vector.extract_strided_slice %115 {offsets = [24, 8], sizes = [8, 8], strides = [1, 1]} : vector<32x16xf32> to vector<8x8xf32>
    %147 = vector.extract_strided_slice %116 {offsets = [1, 0], sizes = [1, 8], strides = [1, 1]} : vector<2x8xf32> to vector<1x8xf32>
    %cst_90 = arith.constant 5.000000e-01 : f32
    %148 = vector.broadcast %cst_90 : f32 to vector<1x8xf32>
    %149 = arith.cmpf ogt, %147, %148 : vector<1x8xf32>
    %cst_91 = arith.constant 0xFF800000 : f32
    %150 = vector.shape_cast %149 : vector<1x8xi1> to vector<1x8xi1>
    %151 = vector.broadcast %150 : vector<1x8xi1> to vector<8x8xi1>
    %152 = vector.broadcast %cst_91 : f32 to vector<8x8xf32>
    %153 = arith.select %151, %146, %152 : vector<8x8xi1>, vector<8x8xf32>
    %c24 = arith.constant 24 : index
    %c0_92 = arith.constant 0 : index
    %154 = vector.load %arg24[%c24, %c0_92] : memref<32x16xf32, #tpu.memory_space<vmem>>, vector<8x8xf32>
    tpu.vector_store %arg24[%c24, %c0_92], %153 {strides = array<i32>} : memref<32x16xf32, #tpu.memory_space<vmem>>, vector<8x8xf32>,
    return
  }
}

</mosaic_0001>

<llo_original>
// kernel: grounding_dino_forward.1
$region0: #{grounding_dino_forward.1}
  #allocation0 [shape = 'u32[]', space=smem, size = 0x4, offset = 0x4, fixed_abs, tag = 'smem constant byte address 0x4 - core index']
  #allocation1 [shape = 'u32[144,128]{1,0:T(1,128)}', space=vmem, size = 0x12000, scoped, tag = 'internal scratch']
  %s0 = inlined_call_operand.vmem [shape: f32[2,3,256], index: 0, kind: input, shape index: {}]
  %s1 = inlined_call_operand.vmem [shape: f32[3,1], index: 1, kind: input, shape index: {}]
  %s2 = inlined_call_operand.vmem [shape: f32[3,1], index: 2, kind: input, shape index: {}]
  %s3 = inlined_call_operand.vmem [shape: f32[128,8], index: 3, kind: input, shape index: {}]
  %s4 = inlined_call_operand.vmem [shape: f32[8,32], index: 4, kind: input, shape index: {}]
  %s5 = inlined_call_operand.vmem [shape: f32[1,32], index: 5, kind: input, shape index: {}]
  %s6 = inlined_call_operand.hbm [shape: f32[1,32], index: 6, kind: input, shape index: {}]
  %s7 = inlined_call_operand.hbm [shape: f32[1,32], index: 7, kind: input, shape index: {}]
  %s8 = inlined_call_operand.vmem [shape: f32[16,16], index: 8, kind: input, shape index: {}]
  %s9 = inlined_call_operand.hbm [shape: f32[16,32], index: 9, kind: input, shape index: {}]
  %s10 = inlined_call_operand.hbm [shape: f32[1,32], index: 10, kind: input, shape index: {}]
  %s11 = inlined_call_operand.vmem [shape: f32[32,32], index: 11, kind: input, shape index: {}]
  %s12 = inlined_call_operand.vmem [shape: f32[32,4], index: 12, kind: input, shape index: {}]
  %s13 = inlined_call_operand.vmem [shape: f32[32,32], index: 13, kind: input, shape index: {}]
  %s14 = inlined_call_operand.hbm [shape: f32[1,32], index: 14, kind: input, shape index: {}]
  %s15 = inlined_call_operand.vmem [shape: f32[32,32], index: 15, kind: input, shape index: {}]
  %s16 = inlined_call_operand.hbm [shape: f32[1,32], index: 16, kind: input, shape index: {}]
  %s17 = inlined_call_operand.vmem [shape: f32[32,4], index: 17, kind: input, shape index: {}]
  %s18 = inlined_call_operand.hbm [shape: f32[1,4], index: 18, kind: input, shape index: {}]
  %s19 = inlined_call_operand.vmem [shape: f32[2,8], index: 19, kind: input, shape index: {}]
  %s20 = inlined_call_operand.vmem [shape: f32[2,3,256], index: 20, kind: output, shape index: {0}]
  %s21 = inlined_call_operand.vmem [shape: f32[128,32], index: 21, kind: output, shape index: {1}]
  %s22 = inlined_call_operand.hbm [shape: f32[16,32], index: 22, kind: output, shape index: {2}]
  %s23 = inlined_call_operand.vmem [shape: f32[32,4], index: 23, kind: output, shape index: {3}]
  %s24 = inlined_call_operand.vmem [shape: f32[32,16], index: 24, kind: output, shape index: {4}]
  %25 = xla_tuple %s20, %s21, %s22, %s23, %s24
  %s26 = sld [smem:[#allocation0]]
  $region150: #{grounding_dino_forward.1} parent=0
    _
  %s28 = ssub.s32 1, %s26
  %s29 = scalar_select 0, %s28, %s26
  $region1: #{grounding_dino_forward.1} parent=0
    #allocation2 [shape = 'u8[512]{0}', space=vmem, size = 0x400, scoped, tag = 'input window, operand 6, single buffered']
    #allocation3 [shape = 's32[1]{0}', space=sflag, size = 0x4, scoped, tag = 'scoped memory for grounding_dino_forward.1']
    #allocation4 [shape = 's32[1]{0}', space=sflag, size = 0x4, scoped, tag = 'scoped memory for grounding_dino_forward.1']
    #allocation5 [shape = 'u8[512]{0}', space=vmem, size = 0x400, scoped, tag = 'input window, operand 7, single buffered']
    #allocation6 [shape = 's32[1]{0}', space=sflag, size = 0x4, scoped, tag = 'scoped memory for grounding_dino_forward.1']
    #allocation7 [shape = 'u8[8192]{0}', space=vmem, size = 0x2000, scoped, tag = 'input window, operand 9, single buffered']
    #allocation8 [shape = 'u8[512]{0}', space=vmem, size = 0x400, scoped, tag = 'input window, operand 10, single buffered']
    #allocation9 [shape = 's32[1]{0}', space=sflag, size = 0x4, scoped, tag = 'scoped memory for grounding_dino_forward.1']
    #allocation10 [shape = 'u8[512]{0}', space=vmem, size = 0x400, scoped, tag = 'input window, operand 14, single buffered']
    #allocation11 [shape = 'u8[512]{0}', space=vmem, size = 0x400, scoped, tag = 'input window, operand 16, single buffered']
    #allocation12 [shape = 's32[1]{0}', space=sflag, size = 0x4, scoped, tag = 'scoped memory for grounding_dino_forward.1']
    #allocation13 [shape = 'u8[512]{0}', space=vmem, size = 0x400, scoped, tag = 'input window, operand 18, single buffered']
    #allocation14 [shape = 'u8[8192]{0}', space=vmem, size = 0x2000, scoped, tag = 'output window, operand 2, single buffered']
    %30 = vsyncpa [#allocation3], 0
    %31 = vsyncpa [#allocation6], 0
    %32 = vsyncpa [#allocation9], 0
    %33 = vsyncpa [#allocation12], 0
    %34 = vsyncpa [#allocation4], 0
    // Predicated region
    $region2: #{grounding_dino_forward.1} parent=1 // pred_check
      _
    $region3: #{grounding_dino_forward.1} parent=1 // pred_check_branch
      %36 = sbr.rel (0) target = $region5
    $region4: #{grounding_dino_forward.1} parent=1 // pred_region
      _
    $region5: #{grounding_dino_forward.1} parent=1 // pred_fallthru
      _
    // Predicated region
    $region6: #{grounding_dino_forward.1} parent=1 // pred_check
      _
    $region7: #{grounding_dino_forward.1} parent=1 // pred_check_branch
      %38 = sbr.rel (0) target = $region9
    $region8: #{grounding_dino_forward.1} parent=1 // pred_region
      _
    $region9: #{grounding_dino_forward.1} parent=1 // pred_fallthru
      _
    // Predicated region
    $region10: #{grounding_dino_forward.1} parent=1 // pred_check
      _
    $region11: #{grounding_dino_forward.1} parent=1 // pred_check_branch
      %40 = sbr.rel (0) target = $region13
    $region12: #{grounding_dino_forward.1} parent=1 // pred_region
      _
    $region13: #{grounding_dino_forward.1} parent=1 // pred_fallthru
      _
    // Predicated region
    $region14: #{grounding_dino_forward.1} parent=1 // pred_check
      _
    $region15: #{grounding_dino_forward.1} parent=1 // pred_check_branch
      %42 = sbr.rel (0) target = $region17
    $region16: #{grounding_dino_forward.1} parent=1 // pred_region
      _
    $region17: #{grounding_dino_forward.1} parent=1 // pred_fallthru
      _
    // Predicated region
    $region18: #{grounding_dino_forward.1} parent=1 // pred_check
      _
    $region19: #{grounding_dino_forward.1} parent=1 // pred_check_branch
      %44 = sbr.rel (0) target = $region21
    $region20: #{grounding_dino_forward.1} parent=1 // pred_region
      _
    $region21: #{grounding_dino_forward.1} parent=1 // pred_fallthru
      _
    // Predicated region
    $region22: #{grounding_dino_forward.1} parent=1 // pred_check
      _
    $region23: #{grounding_dino_forward.1} parent=1 // pred_check_branch
      %46 = sbr.rel (0) target = $region25
    $region24: #{grounding_dino_forward.1} parent=1 // pred_region
      _
    $region25: #{grounding_dino_forward.1} parent=1 // pred_fallthru
      _
    // Predicated region
    $region26: #{grounding_dino_forward.1} parent=1 // pred_check
      _
    $region27: #{grounding_dino_forward.1} parent=1 // pred_check_branch
      %48 = sbr.rel (0) target = $region29
    $region28: #{grounding_dino_forward.1} parent=1 // pred_region
      %s50 = ssub.s32 16, 16
      %51 = vsyncadd [#allocation3], %s50
      %s53 = sshll.u32 [#allocation2], 4
      %s54 = int_to_ptr.vmem [resolvable:$true] %s53
      %56 = dma.hbm_to_vmem [thread:$0]  %s6, 16, %s54, [#allocation3]
    $region29: #{grounding_dino_forward.1} parent=1 // pred_fallthru
      _
    // Predicated region
    $region30: #{grounding_dino_forward.1} parent=1 // pred_check
      _
    $region31: #{grounding_dino_forward.1} parent=1 // pred_check_branch
      %58 = sbr.rel (0) target = $region33
    $region32: #{grounding_dino_forward.1} parent=1 // pred_region
      %s60 = ssub.s32 16, 16
      %61 = vsyncadd [#allocation6], %s60
      %s63 = sshll.u32 [#allocation5], 4
      %s64 = int_to_ptr.vmem [resolvable:$true] %s63
      %66 = dma.hbm_to_vmem [thread:$0]  %s7, 16, %s64, [#allocation6]
    $region33: #{grounding_dino_forward.1} parent=1 // pred_fallthru
      _
    // Predicated region
    $region34: #{grounding_dino_forward.1} parent=1 // pred_check
      _
    $region35: #{grounding_dino_forward.1} parent=1 // pred_check_branch
      %68 = sbr.rel (0) target = $region37
    $region36: #{grounding_dino_forward.1} parent=1 // pred_region
      _
    $region37: #{grounding_dino_forward.1} parent=1 // pred_fallthru
      _
    // Predicated region
    $region38: #{grounding_dino_forward.1} parent=1 // pred_check
      _
    $region39: #{grounding_dino_forward.1} parent=1 // pred_check_branch
      %70 = sbr.rel (0) target = $region41
    $region40: #{grounding_dino_forward.1} parent=1 // pred_region
      %s72 = ssub.s32 256, 256
      %73 = vsyncadd [#allocation6], %s72
      %s74 = sshll.u32 [#allocation7], 4
      %s75 = int_to_ptr.vmem [resolvable:$true] %s74
      %80 = dma.hbm_to_vmem [thread:$0]  %s9, 256, %s75, [#allocation6], 128, 128, 8
    $region41: #{grounding_dino_forward.1} parent=1 // pred_fallthru
      _
    // Predicated region
    $region42: #{grounding_dino_forward.1} parent=1 // pred_check
      _
    $region43: #{grounding_dino_forward.1} parent=1 // pred_check_branch
      %82 = sbr.rel (0) target = $region45
    $region44: #{grounding_dino_forward.1} parent=1 // pred_region
      %s84 = ssub.s32 16, 16
      %85 = vsyncadd [#allocation9], %s84
      %s87 = sshll.u32 [#allocation8], 4
      %s88 = int_to_ptr.vmem [resolvable:$true] %s87
      %90 = dma.hbm_to_vmem [thread:$0]  %s10, 16, %s88, [#allocation9]
    $region45: #{grounding_dino_forward.1} parent=1 // pred_fallthru
      _
    // Predicated region
    $region46: #{grounding_dino_forward.1} parent=1 // pred_check
      _
    $region47: #{grounding_dino_forward.1} parent=1 // pred_check_branch
      %92 = sbr.rel (0) target = $region49
    $region48: #{grounding_dino_forward.1} parent=1 // pred_region
      _
    $region49: #{grounding_dino_forward.1} parent=1 // pred_fallthru
      _
    // Predicated region
    $region50: #{grounding_dino_forward.1} parent=1 // pred_check
      _
    $region51: #{grounding_dino_forward.1} parent=1 // pred_check_branch
      %94 = sbr.rel (0) target = $region53
    $region52: #{grounding_dino_forward.1} parent=1 // pred_region
      _
    $region53: #{grounding_dino_forward.1} parent=1 // pred_fallthru
      _
    // Predicated region
    $region54: #{grounding_dino_forward.1} parent=1 // pred_check
      _
    $region55: #{grounding_dino_forward.1} parent=1 // pred_check_branch
      %96 = sbr.rel (0) target = $region57
    $region56: #{grounding_dino_forward.1} parent=1 // pred_region
      _
    $region57: #{grounding_dino_forward.1} parent=1 // pred_fallthru
      _
    // Predicated region
    $region58: #{grounding_dino_forward.1} parent=1 // pred_check
      _
    $region59: #{grounding_dino_forward.1} parent=1 // pred_check_branch
      %98 = sbr.rel (0) target = $region61
    $region60: #{grounding_dino_forward.1} parent=1 // pred_region
      %s100 = ssub.s32 16, 16
      %101 = vsyncadd [#allocation9], %s100
      %s103 = sshll.u32 [#allocation10], 4
      %s104 = int_to_ptr.vmem [resolvable:$true] %s103
      %106 = dma.hbm_to_vmem [thread:$0]  %s14, 16, %s104, [#allocation9]
    $region61: #{grounding_dino_forward.1} parent=1 // pred_fallthru
      _
    // Predicated region
    $region62: #{grounding_dino_forward.1} parent=1 // pred_check
      _
    $region63: #{grounding_dino_forward.1} parent=1 // pred_check_branch
      %108 = sbr.rel (0) target = $region65
    $region64: #{grounding_dino_forward.1} parent=1 // pred_region
      _
    $region65: #{grounding_dino_forward.1} parent=1 // pred_fallthru
      _
    // Predicated region
    $region66: #{grounding_dino_forward.1} parent=1 // pred_check
      _
    $region67: #{grounding_dino_forward.1} parent=1 // pred_check_branch
      %110 = sbr.rel (0) target = $region69
    $region68: #{grounding_dino_forward.1} parent=1 // pred_region
      %s112 = ssub.s32 16, 16
      %113 = vsyncadd [#allocation12], %s112
      %s115 = sshll.u32 [#allocation11], 4
      %s116 = int_to_ptr.vmem [resolvable:$true] %s115
      %118 = dma.hbm_to_vmem [thread:$0]  %s16, 16, %s116, [#allocation12]
    $region69: #{grounding_dino_forward.1} parent=1 // pred_fallthru
      _
    // Predicated region
    $region70: #{grounding_dino_forward.1} parent=1 // pred_check
      _
    $region71: #{grounding_dino_forward.1} parent=1 // pred_check_branch
      %120 = sbr.rel (0) target = $region73
    $region72: #{grounding_dino_forward.1} parent=1 // pred_region
      _
    $region73: #{grounding_dino_forward.1} parent=1 // pred_fallthru
      _
    // Predicated region
    $region74: #{grounding_dino_forward.1} parent=1 // pred_check
      _
    $region75: #{grounding_dino_forward.1} parent=1 // pred_check_branch
      %122 = sbr.rel (0) target = $region77
    $region76: #{grounding_dino_forward.1} parent=1 // pred_region
      %s124 = ssub.s32 16, 16
      %125 = vsyncadd [#allocation12], %s124
      %s127 = sshll.u32 [#allocation13], 4
      %s128 = int_to_ptr.vmem [resolvable:$true] %s127
      %130 = dma.hbm_to_vmem [thread:$0]  %s18, 16, %s128, [#allocation12]
    $region77: #{grounding_dino_forward.1} parent=1 // pred_fallthru
      _
    // Predicated region
    $region78: #{grounding_dino_forward.1} parent=1 // pred_check
      _
    $region79: #{grounding_dino_forward.1} parent=1 // pred_check_branch
      %132 = sbr.rel (0) target = $region81
    $region80: #{grounding_dino_forward.1} parent=1 // pred_region
      _
    $region81: #{grounding_dino_forward.1} parent=1 // pred_fallthru
      _
    // Predicated region
    $region82: #{grounding_dino_forward.1} parent=1 // pred_check
      _
    $region83: #{grounding_dino_forward.1} parent=1 // pred_check_branch
      %134 = sbr.rel (0) target = $region85
    $region84: #{grounding_dino_forward.1} parent=1 // pred_region
      %135 = dma.done [#allocation3], 16
    $region85: #{grounding_dino_forward.1} parent=1 // pred_fallthru
      _
    // Predicated region
    $region86: #{grounding_dino_forward.1} parent=1 // pred_check
      _
    $region87: #{grounding_dino_forward.1} parent=1 // pred_check_branch
      %137 = sbr.rel (0) target = $region89
    $region88: #{grounding_dino_forward.1} parent=1 // pred_region
      %138 = dma.done [#allocation6], 16
    $region89: #{grounding_dino_forward.1} parent=1 // pred_fallthru
      _
    // Predicated region
    $region90: #{grounding_dino_forward.1} parent=1 // pred_check
      _
    $region91: #{grounding_dino_forward.1} parent=1 // pred_check_branch
      %140 = sbr.rel (0) target = $region93
    $region92: #{grounding_dino_forward.1} parent=1 // pred_region
      %141 = dma.done [#allocation6], 256
    $region93: #{grounding_dino_forward.1} parent=1 // pred_fallthru
      _
    // Predicated region
    $region94: #{grounding_dino_forward.1} parent=1 // pred_check
      _
    $region95: #{grounding_dino_forward.1} parent=1 // pred_check_branch
      %143 = sbr.rel (0) target = $region97
    $region96: #{grounding_dino_forward.1} parent=1 // pred_region
      %144 = dma.done [#allocation9], 16
    $region97: #{grounding_dino_forward.1} parent=1 // pred_fallthru
      _
    // Predicated region
    $region98: #{grounding_dino_forward.1} parent=1 // pred_check
      _
    $region99: #{grounding_dino_forward.1} parent=1 // pred_check_branch
      %146 = sbr.rel (0) target = $region101
    $region100: #{grounding_dino_forward.1} parent=1 // pred_region
      %147 = dma.done [#allocation9], 16
    $region101: #{grounding_dino_forward.1} parent=1 // pred_fallthru
      _
    // Predicated region
    $region102: #{grounding_dino_forward.1} parent=1 // pred_check
      _
    $region103: #{grounding_dino_forward.1} parent=1 // pred_check_branch
      %149 = sbr.rel (0) target = $region105
    $region104: #{grounding_dino_forward.1} parent=1 // pred_region
      %150 = dma.done [#allocation12], 16
    $region105: #{grounding_dino_forward.1} parent=1 // pred_fallthru
      _
    // Predicated region
    $region106: #{grounding_dino_forward.1} parent=1 // pred_check
      _
    $region107: #{grounding_dino_forward.1} parent=1 // pred_check_branch
      %152 = sbr.rel (0) target = $region109
    $region108: #{grounding_dino_forward.1} parent=1 // pred_region
      %153 = dma.done [#allocation12], 16
    $region109: #{grounding_dino_forward.1} parent=1 // pred_fallthru
      _
    %v154 = vld [vmem:[%s0] sm:$0x77]
    %v155 = vld [vmem:[%s0 + $0x8] sm:$0x77]
    %v156 = vld [vmem:[%s1] sm:$0x7]
    %158 = vset.pattern.permute.xlu0 0
    %159 = vperm.xlu0 %158, %v156
    %v160 = vpop.permute.xlu0 %159
    %v162 = vunpack.c.l.s4 839922192
    %v163 = vunpack.c.0.s8 %v162
    %v164 = vlaneseq
    %v165 = vshrl.u32 %v164, 7
    %v166 = vsub.s32 %v163, %v165
    %v167 = vrot.slane %v160, %v166
    %v169 = vsub.f32 %v154, %v167
    %v170 = vsub.f32 %v155, %v167
    %v171 = vld [vmem:[%s2] sm:$0x7]
    %173 = vset.pattern.permute.xlu0 0
    %174 = vperm.xlu0 %173, %v171
    %v175 = vpop.permute.xlu0 %174
    %v177 = vunpack.c.l.s4 839922192
    %v178 = vunpack.c.0.s8 %v177
    %v179 = vlaneseq
    %v180 = vshrl.u32 %v179, 7
    %v181 = vsub.s32 %v178, %v180
    %v182 = vrot.slane %v175, %v181
    %v184 = vmul.f32 %v169, %v182
    %v185 = vmul.f32 %v170, %v182
    %186 = vst [vmem:[%s20] sm:$0x77] %v184
    %187 = vst [vmem:[%s20 + $0x8] sm:$0x77] %v185
    %v188 = vld [vmem:[%s3] sm:$0xff]
    %v189 = vld [vmem:[%s3 + $0x8] sm:$0xff]
    %v190 = vld [vmem:[%s3 + $0x10] sm:$0xff]
    %v191 = vld [vmem:[%s3 + $0x18] sm:$0xff]
    %v192 = vld [vmem:[%s3 + $0x20] sm:$0xff]
    %v193 = vld [vmem:[%s3 + $0x28] sm:$0xff]
    %v194 = vld [vmem:[%s3 + $0x30] sm:$0xff]
    %v195 = vld [vmem:[%s3 + $0x38] sm:$0xff]
    %v196 = vld [vmem:[%s3 + $0x40] sm:$0xff]
    %v197 = vld [vmem:[%s3 + $0x48] sm:$0xff]
    %v198 = vld [vmem:[%s3 + $0x50] sm:$0xff]
    %v199 = vld [vmem:[%s3 + $0x58] sm:$0xff]
    %v200 = vld [vmem:[%s3 + $0x60] sm:$0xff]
    %v201 = vld [vmem:[%s3 + $0x68] sm:$0xff]
    %v202 = vld [vmem:[%s3 + $0x70] sm:$0xff]
    %v203 = vld [vmem:[%s3 + $0x78] sm:$0xff]
    %v204 = vld [vmem:[%s4] sm:$0xff]
    %v205 = vld [vmem:[%s5] sm:$0x1]
    %v207 = vlaneseq
    %v208 = vshrl.u32 %v207, 7
    %v209 = vsub.s32 0, %v208
    %v210 = vrot.slane %v205, %v209
    %vm212 = vcmask 64512
    %v214 = vsel %vm212, %v188, 0
    %v217 = vsel %vm212, %v189, 0
    %v220 = vsel %vm212, %v190, 0
    %v223 = vsel %vm212, %v191, 0
    %v226 = vsel %vm212, %v192, 0
    %v229 = vsel %vm212, %v193, 0
    %v232 = vsel %vm212, %v194, 0
    %v235 = vsel %vm212, %v195, 0
    %v238 = vsel %vm212, %v196, 0
    %v241 = vsel %vm212, %v197, 0
    %v244 = vsel %vm212, %v198, 0
    %v247 = vsel %vm212, %v199, 0
    %v250 = vsel %vm212, %v200, 0
    %v253 = vsel %vm212, %v201, 0
    %v256 = vsel %vm212, %v202, 0
    %v259 = vsel %vm212, %v203, 0
    %261 = vmatprep.subr.mxu0 0.0
    %262 = vmatpush1.msra.mxu0 0.0
    %263 = vmatprep.subr.mxu0 0.0
    %264 = vmatpush1.msra.mxu0 0.0
    %265 = vmatprep.subr.mxu0 0.0
    %266 = vmatpush1.msra.mxu0 0.0
    %267 = vmatprep.subr.mxu0 0.0
    %268 = vmatpush1.msra.mxu0 0.0
    %269 = vmatprep.subr.mxu0 0.0
    %270 = vmatpush1.msra.mxu0 0.0
    %271 = vmatprep.subr.mxu0 0.0
    %272 = vmatpush1.msra.mxu0 0.0
    %273 = vmatprep.subr.mxu0 0.0
    %274 = vmatpush1.msra.mxu0 0.0
    %275 = vmatprep.subr.mxu0 0.0
    %276 = vmatpush1.msra.mxu0 0.0
    %277 = vmatprep.subr.mxu0 0.0
    %278 = vmatpush1.msra.mxu0 0.0
    %279 = vmatprep.subr.mxu0 0.0
    %280 = vmatpush1.msra.mxu0 0.0
    %281 = vmatprep.subr.mxu0 0.0
    %282 = vmatpush1.msra.mxu0 0.0
    %283 = vmatprep.subr.mxu0 0.0
    %284 = vmatpush1.msra.mxu0 0.0
    %285 = vmatprep.subr.mxu0 0.0
    %286 = vmatpush1.msra.mxu0 0.0
    %287 = vmatprep.subr.mxu0 0.0
    %288 = vmatpush1.msra.mxu0 0.0
    %289 = vmatprep.subr.mxu0 0.0
    %290 = vmatpush1.msra.mxu0 0.0
    %291 = vmatprep.subr.mxu0 0.0
    %292 = vmatpush1.msra.mxu0 %v204
    %293 = vmatprep.subr.mxu0 0.0
    %294 = vmatpush2.msra.mxu0 0.0
    %295 = vmatprep.subr.mxu0 0.0
    %296 = vmatpush2.msra.mxu0 0.0
    %297 = vmatprep.subr.mxu0 0.0
    %298 = vmatpush2.msra.mxu0 0.0
    %299 = vmatprep.subr.mxu0 0.0
    %300 = vmatpush2.msra.mxu0 0.0
    %301 = vmatprep.subr.mxu0 0.0
    %302 = vmatpush2.msra.mxu0 0.0
    %303 = vmatprep.subr.mxu0 0.0
    %304 = vmatpush2.msra.mxu0 0.0
    %305 = vmatprep.subr.mxu0 0.0
    %306 = vmatpush2.msra.mxu0 0.0
    %307 = vmatprep.subr.mxu0 0.0
    %308 = vmatpush2.msra.mxu0 0.0
    %309 = vmatprep.subr.mxu0 0.0
    %310 = vmatpush2.msra.mxu0 0.0
    %311 = vmatprep.subr.mxu0 0.0
    %312 = vmatpush2.msra.mxu0 0.0
    %313 = vmatprep.subr.mxu0 0.0
    %314 = vmatpush2.msra.mxu0 0.0
    %315 = vmatprep.subr.mxu0 0.0
    %316 = vmatpush2.msra.mxu0 0.0
    %317 = vmatprep.subr.mxu0 0.0
    %318 = vmatpush2.msra.mxu0 0.0
    %319 = vmatprep.subr.mxu0 0.0
    %320 = vmatpush2.msra.mxu0 0.0
    %321 = vmatprep.subr.mxu0 0.0
    %322 = vmatpush2.msra.mxu0 0.0
    %323 = vmatprep.subr.mxu0 0.0
    %324 = vmatpush2.msra.mxu0 0.0
    %325 = vmatprep.mubr.f32.mxu0 0.0
    %326 = vmatmul.mubr.f32.gmra.mxu0 %v214
    %v327 = vpop.f32.mrf.mxu0
    %v328 = vadd.f32 %v210, %v327
    %v329 = vpop.f32.mrf.mxu0
    %330 = vmatprep.mubr.f32.mxu0 0.0
    %331 = vmatmul.mubr.f32.gmra.mxu0 %v217
    %v332 = vpop.f32.mrf.mxu0
    %v333 = vadd.f32 %v210, %v332
    %v334 = vpop.f32.mrf.mxu0
    %335 = vmatprep.mubr.f32.mxu0 0.0
    %336 = vmatmul.mubr.f32.gmra.mxu0 %v220
    %v337 = vpop.f32.mrf.mxu0
    %v338 = vadd.f32 %v210, %v337
    %v339 = vpop.f32.mrf.mxu0
    %340 = vmatprep.mubr.f32.mxu0 0.0
    %341 = vmatmul.mubr.f32.gmra.mxu0 %v223
    %v342 = vpop.f32.mrf.mxu0
    %v343 = vadd.f32 %v210, %v342
    %v344 = vpop.f32.mrf.mxu0
    %345 = vmatprep.mubr.f32.mxu0 0.0
    %346 = vmatmul.mubr.f32.gmra.mxu0 %v226
    %v347 = vpop.f32.mrf.mxu0
    %v348 = vadd.f32 %v210, %v347
    %v349 = vpop.f32.mrf.mxu0
    %350 = vmatprep.mubr.f32.mxu0 0.0
    %351 = vmatmul.mubr.f32.gmra.mxu0 %v229
    %v352 = vpop.f32.mrf.mxu0
    %v353 = vadd.f32 %v210, %v352
    %v354 = vpop.f32.mrf.mxu0
    %355 = vmatprep.mubr.f32.mxu0 0.0
    %356 = vmatmul.mubr.f32.gmra.mxu0 %v232
    %v357 = vpop.f32.mrf.mxu0
    %v358 = vadd.f32 %v210, %v357
    %v359 = vpop.f32.mrf.mxu0
    %360 = vmatprep.mubr.f32.mxu0 0.0
    %361 = vmatmul.mubr.f32.gmra.mxu0 %v235
    %v362 = vpop.f32.mrf.mxu0
    %v363 = vadd.f32 %v210, %v362
    %v364 = vpop.f32.mrf.mxu0
    %365 = vmatprep.mubr.f32.mxu0 0.0
    %366 = vmatmul.mubr.f32.gmra.mxu0 %v238
    %v367 = vpop.f32.mrf.mxu0
    %v368 = vadd.f32 %v210, %v367
    %v369 = vpop.f32.mrf.mxu0
    %370 = vmatprep.mubr.f32.mxu0 0.0
    %371 = vmatmul.mubr.f32.gmra.mxu0 %v241
    %v372 = vpop.f32.mrf.mxu0
    %v373 = vadd.f32 %v210, %v372
    %v374 = vpop.f32.mrf.mxu0
    %375 = vmatprep.mubr.f32.mxu0 0.0
    %376 = vmatmul.mubr.f32.gmra.mxu0 %v244
    %v377 = vpop.f32.mrf.mxu0
    %v378 = vadd.f32 %v210, %v377
    %v379 = vpop.f32.mrf.mxu0
    %380 = vmatprep.mubr.f32.mxu0 0.0
    %381 = vmatmul.mubr.f32.gmra.mxu0 %v247
    %v382 = vpop.f32.mrf.mxu0
    %v383 = vadd.f32 %v210, %v382
    %v384 = vpop.f32.mrf.mxu0
    %385 = vmatprep.mubr.f32.mxu0 0.0
    %386 = vmatmul.mubr.f32.gmra.mxu0 %v250
    %v387 = vpop.f32.mrf.mxu0
    %v388 = vadd.f32 %v210, %v387
    %v389 = vpop.f32.mrf.mxu0
    %390 = vmatprep.mubr.f32.mxu0 0.0
    %391 = vmatmul.mubr.f32.gmra.mxu0 %v253
    %v392 = vpop.f32.mrf.mxu0
    %v393 = vadd.f32 %v210, %v392
    %v394 = vpop.f32.mrf.mxu0
    %395 = vmatprep.mubr.f32.mxu0 0.0
    %396 = vmatmul.mubr.f32.gmra.mxu0 %v256
    %v397 = vpop.f32.mrf.mxu0
    %v398 = vadd.f32 %v210, %v397
    %v399 = vpop.f32.mrf.mxu0
    %400 = vmatprep.mubr.f32.mxu0 0.0
    %401 = vmatmul.mubr.f32.gmra.mxu0 %v259
    %v402 = vpop.f32.mrf.mxu0
    %v403 = vadd.f32 %v210, %v402
    %v404 = vpop.f32.mrf.mxu0
    %405 = vdwg.mxu0
    %vm406 = vcmask 261120
    %v407 = vsel %vm406, %v328, 0.0
    %v408 = vsel %vm406, %v333, 0.0
    %v409 = vadd.f32 %v407, %v408
    %v410 = vsel %vm406, %v338, 0.0
    %v411 = vadd.f32 %v409, %v410
    %v412 = vsel %vm406, %v343, 0.0
    %v413 = vadd.f32 %v411, %v412
    %v414 = vsel %vm406, %v348, 0.0
    %v415 = vadd.f32 %v413, %v414
    %v416 = vsel %vm406, %v353, 0.0
    %v417 = vadd.f32 %v415, %v416
    %v418 = vsel %vm406, %v358, 0.0
    %v419 = vadd.f32 %v417, %v418
    %v420 = vsel %vm406, %v363, 0.0
    %v421 = vadd.f32 %v419, %v420
    %v422 = vrot.slane %v421, 4
    %v423 = vadd.f32 %v421, %v422
    %v424 = vrot.slane %v423, 2
    %v425 = vadd.f32 %v423, %v424
    %v426 = vrot.slane %v425, 1
    %v427 = vadd.f32 %v425, %v426
    %v428 = vrcp.pop 64.0
    %v429 = vmul.f32 %v427, %v428
    %v430 = vsub.f32 %v328, %v429
    %v431 = vsub.f32 %v333, %v429
    %v432 = vsub.f32 %v338, %v429
    %v433 = vsub.f32 %v343, %v429
    %v434 = vsub.f32 %v348, %v429
    %v435 = vsub.f32 %v353, %v429
    %v436 = vsub.f32 %v358, %v429
    %v437 = vsub.f32 %v363, %v429
    %v438 = vmul.f32 %v430, %v430
    %v439 = vmul.f32 %v431, %v431
    %v440 = vmul.f32 %v432, %v432
    %v441 = vmul.f32 %v433, %v433
    %v442 = vmul.f32 %v434, %v434
    %v443 = vmul.f32 %v435, %v435
    %v444 = vmul.f32 %v436, %v436
    %v445 = vmul.f32 %v437, %v437
    %v446 = vsel %vm406, %v438, 0.0
    %v447 = vsel %vm406, %v439, 0.0
    %v448 = vadd.f32 %v446, %v447
    %v449 = vsel %vm406, %v440, 0.0
    %v450 = vadd.f32 %v448, %v449
    %v451 = vsel %vm406, %v441, 0.0
    %v452 = vadd.f32 %v450, %v451
    %v453 = vsel %vm406, %v442, 0.0
    %v454 = vadd.f32 %v452, %v453
    %v455 = vsel %vm406, %v443, 0.0
    %v456 = vadd.f32 %v454, %v455
    %v457 = vsel %vm406, %v444, 0.0
    %v458 = vadd.f32 %v456, %v457
    %v459 = vsel %vm406, %v445, 0.0
    %v460 = vadd.f32 %v458, %v459
    %v461 = vrot.slane %v460, 4
    %v462 = vadd.f32 %v460, %v461
    %v463 = vrot.slane %v462, 2
    %v464 = vadd.f32 %v462, %v463
    %v465 = vrot.slane %v464, 1
    %v466 = vadd.f32 %v464, %v465
    %v467 = vmul.f32 %v466, %v428
    %v468 = vadd.f32 %v467, 1e-05
    %v469 = vrsqrt.pop %v468
    %v470 = vmul.f32 %v430, %v469
    %v471 = vmul.f32 %v431, %v469
    %v472 = vmul.f32 %v432, %v469
    %v473 = vmul.f32 %v433, %v469
    %v474 = vmul.f32 %v434, %v469
    %v475 = vmul.f32 %v435, %v469
    %v476 = vmul.f32 %v436, %v469
    %v477 = vmul.f32 %v437, %v469
    %v478 = vld [vmem:[#allocation2] sm:$0x1]
    %v480 = vlaneseq
    %v481 = vshrl.u32 %v480, 7
    %v482 = vsub.s32 0, %v481
    %v483 = vrot.slane %v478, %v482
    %v485 = vmul.f32 %v470, %v483
    %v486 = vmul.f32 %v471, %v483
    %v487 = vmul.f32 %v472, %v483
    %v488 = vmul.f32 %v473, %v483
    %v489 = vmul.f32 %v474, %v483
    %v490 = vmul.f32 %v475, %v483
    %v491 = vmul.f32 %v476, %v483
    %v492 = vmul.f32 %v477, %v483
    %v493 = vld [vmem:[#allocation5] sm:$0x1]
    %v495 = vlaneseq
    %v496 = vshrl.u32 %v495, 7
    %v497 = vsub.s32 0, %v496
    %v498 = vrot.slane %v493, %v497
    %v500 = vadd.f32 %v485, %v498
    %v501 = vadd.f32 %v486, %v498
    %v502 = vadd.f32 %v487, %v498
    %v503 = vadd.f32 %v488, %v498
    %v504 = vadd.f32 %v489, %v498
    %v505 = vadd.f32 %v490, %v498
    %v506 = vadd.f32 %v491, %v498
    %v507 = vadd.f32 %v492, %v498
    %508 = vst.msk [vmem:[%s21] sm:$0xff] %vm406, %v500
    %509 = vst.msk [vmem:[%s21 + $0x8] sm:$0xff] %vm406, %v501
    %510 = vst.msk [vmem:[%s21 + $0x10] sm:$0xff] %vm406, %v502
    %511 = vst.msk [vmem:[%s21 + $0x18] sm:$0xff] %vm406, %v503
    %512 = vst.msk [vmem:[%s21 + $0x20] sm:$0xff] %vm406, %v504
    %513 = vst.msk [vmem:[%s21 + $0x28] sm:$0xff] %vm406, %v505
    %514 = vst.msk [vmem:[%s21 + $0x30] sm:$0xff] %vm406, %v506
    %515 = vst.msk [vmem:[%s21 + $0x38] sm:$0xff] %vm406, %v507
    %v516 = vsel %vm406, %v368, 0.0
    %v517 = vsel %vm406, %v373, 0.0
    %v518 = vadd.f32 %v516, %v517
    %v519 = vsel %vm406, %v378, 0.0
    %v520 = vadd.f32 %v518, %v519
    %v521 = vsel %vm406, %v383, 0.0
    %v522 = vadd.f32 %v520, %v521
    %v523 = vsel %vm406, %v388, 0.0
    %v524 = vadd.f32 %v522, %v523
    %v525 = vsel %vm406, %v393, 0.0
    %v526 = vadd.f32 %v524, %v525
    %v527 = vsel %vm406, %v398, 0.0
    %v528 = vadd.f32 %v526, %v527
    %v529 = vsel %vm406, %v403, 0.0
    %v530 = vadd.f32 %v528, %v529
    %v531 = vrot.slane %v530, 4
    %v532 = vadd.f32 %v530, %v531
    %v533 = vrot.slane %v532, 2
    %v534 = vadd.f32 %v532, %v533
    %v535 = vrot.slane %v534, 1
    %v536 = vadd.f32 %v534, %v535
    %v537 = vmul.f32 %v536, %v428
    %v538 = vsub.f32 %v368, %v537
    %v539 = vsub.f32 %v373, %v537
    %v540 = vsub.f32 %v378, %v537
    %v541 = vsub.f32 %v383, %v537
    %v542 = vsub.f32 %v388, %v537
    %v543 = vsub.f32 %v393, %v537
    %v544 = vsub.f32 %v398, %v537
    %v545 = vsub.f32 %v403, %v537
    %v546 = vmul.f32 %v538, %v538
    %v547 = vmul.f32 %v539, %v539
    %v548 = vmul.f32 %v540, %v540
    %v549 = vmul.f32 %v541, %v541
    %v550 = vmul.f32 %v542, %v542
    %v551 = vmul.f32 %v543, %v543
    %v552 = vmul.f32 %v544, %v544
    %v553 = vmul.f32 %v545, %v545
    %v554 = vsel %vm406, %v546, 0.0
    %v555 = vsel %vm406, %v547, 0.0
    %v556 = vadd.f32 %v554, %v555
    %v557 = vsel %vm406, %v548, 0.0
    %v558 = vadd.f32 %v556, %v557
    %v559 = vsel %vm406, %v549, 0.0
    %v560 = vadd.f32 %v558, %v559
    %v561 = vsel %vm406, %v550, 0.0
    %v562 = vadd.f32 %v560, %v561
    %v563 = vsel %vm406, %v551, 0.0
    %v564 = vadd.f32 %v562, %v563
    %v565 = vsel %vm406, %v552, 0.0
    %v566 = vadd.f32 %v564, %v565
    %v567 = vsel %vm406, %v553, 0.0
    %v568 = vadd.f32 %v566, %v567
    %v569 = vrot.slane %v568, 4
    %v570 = vadd.f32 %v568, %v569
    %v571 = vrot.slane %v570, 2
    %v572 = vadd.f32 %v570, %v571
    %v573 = vrot.slane %v572, 1
    %v574 = vadd.f32 %v572, %v573
    %v575 = vmul.f32 %v574, %v428
    %v576 = vadd.f32 %v575, 1e-05
    %v577 = vrsqrt.pop %v576
    %v578 = vmul.f32 %v538, %v577
    %v579 = vmul.f32 %v539, %v577
    %v580 = vmul.f32 %v540, %v577
    %v581 = vmul.f32 %v541, %v577
    %v582 = vmul.f32 %v542, %v577
    %v583 = vmul.f32 %v543, %v577
    %v584 = vmul.f32 %v544, %v577
    %v585 = vmul.f32 %v545, %v577
    %v586 = vld [vmem:[#allocation2] sm:$0x1]
    %v588 = vlaneseq
    %v589 = vshrl.u32 %v588, 7
    %v590 = vsub.s32 0, %v589
    %v591 = vrot.slane %v586, %v590
    %v593 = vmul.f32 %v578, %v591
    %v594 = vmul.f32 %v579, %v591
    %v595 = vmul.f32 %v580, %v591
    %v596 = vmul.f32 %v581, %v591
    %v597 = vmul.f32 %v582, %v591
    %v598 = vmul.f32 %v583, %v591
    %v599 = vmul.f32 %v584, %v591
    %v600 = vmul.f32 %v585, %v591
    %v601 = vld [vmem:[#allocation5] sm:$0x1]
    %v603 = vlaneseq
    %v604 = vshrl.u32 %v603, 7
    %v605 = vsub.s32 0, %v604
    %v606 = vrot.slane %v601, %v605
    %v608 = vadd.f32 %v593, %v606
    %v609 = vadd.f32 %v594, %v606
    %v610 = vadd.f32 %v595, %v606
    %v611 = vadd.f32 %v596, %v606
    %v612 = vadd.f32 %v597, %v606
    %v613 = vadd.f32 %v598, %v606
    %v614 = vadd.f32 %v599, %v606
    %v615 = vadd.f32 %v600, %v606
    %616 = vst.msk [vmem:[%s21 + $0x40] sm:$0xff] %vm406, %v608
    %617 = vst.msk [vmem:[%s21 + $0x48] sm:$0xff] %vm406, %v609
    %618 = vst.msk [vmem:[%s21 + $0x50] sm:$0xff] %vm406, %v610
    %619 = vst.msk [vmem:[%s21 + $0x58] sm:$0xff] %vm406, %v611
    %620 = vst.msk [vmem:[%s21 + $0x60] sm:$0xff] %vm406, %v612
    %621 = vst.msk [vmem:[%s21 + $0x68] sm:$0xff] %vm406, %v613
    %622 = vst.msk [vmem:[%s21 + $0x70] sm:$0xff] %vm406, %v614
    %623 = vst.msk [vmem:[%s21 + $0x78] sm:$0xff] %vm406, %v615
    %v624 = vld [vmem:[%s8] sm:$0xff]
    %v625 = vld [vmem:[%s8 + $0x8] sm:$0xff]
    %v626 = vld [vmem:[#allocation7] sm:$0xff]
    %v627 = vld [vmem:[#allocation7 + $0x8] sm:$0xff]
    %v628 = vld [vmem:[#allocation8] sm:$0x1]
    %v630 = vlaneseq
    %v631 = vshrl.u32 %v630, 7
    %v632 = vsub.s32 0, %v631
    %v633 = vrot.slane %v628, %v632
    %vm635 = vcmask 130048
    %v637 = vsel %vm635, %v624, 0
    %v640 = vsel %vm635, %v625, 0
    %642 = vmatprep.subr.mxu0 0.0
    %643 = vmatpush1.msra.mxu0 0.0
    %644 = vmatprep.subr.mxu0 0.0
    %645 = vmatpush1.msra.mxu0 0.0
    %646 = vmatprep.subr.mxu0 0.0
    %647 = vmatpush1.msra.mxu0 0.0
    %648 = vmatprep.subr.mxu0 0.0
    %649 = vmatpush1.msra.mxu0 0.0
    %650 = vmatprep.subr.mxu0 0.0
    %651 = vmatpush1.msra.mxu0 0.0
    %652 = vmatprep.subr.mxu0 0.0
    %653 = vmatpush1.msra.mxu0 0.0
    %654 = vmatprep.subr.mxu0 0.0
    %655 = vmatpush1.msra.mxu0 0.0
    %656 = vmatprep.subr.mxu0 0.0
    %657 = vmatpush1.msra.mxu0 0.0
    %658 = vmatprep.subr.mxu0 0.0
    %659 = vmatpush1.msra.mxu0 0.0
    %660 = vmatprep.subr.mxu0 0.0
    %661 = vmatpush1.msra.mxu0 0.0
    %662 = vmatprep.subr.mxu0 0.0
    %663 = vmatpush1.msra.mxu0 0.0
    %664 = vmatprep.subr.mxu0 0.0
    %665 = vmatpush1.msra.mxu0 0.0
    %666 = vmatprep.subr.mxu0 0.0
    %667 = vmatpush1.msra.mxu0 0.0
    %668 = vmatprep.subr.mxu0 0.0
    %669 = vmatpush1.msra.mxu0 0.0
    %670 = vmatprep.subr.mxu0 0.0
    %671 = vmatpush1.msra.mxu0 %v627
    %672 = vmatprep.subr.mxu0 0.0
    %673 = vmatpush1.msra.mxu0 %v626
    %674 = vmatprep.subr.mxu0 0.0
    %675 = vmatpush2.msra.mxu0 0.0
    %676 = vmatprep.subr.mxu0 0.0
    %677 = vmatpush2.msra.mxu0 0.0
    %678 = vmatprep.subr.mxu0 0.0
    %679 = vmatpush2.msra.mxu0 0.0
    %680 = vmatprep.subr.mxu0 0.0
    %681 = vmatpush2.msra.mxu0 0.0
    %682 = vmatprep.subr.mxu0 0.0
    %683 = vmatpush2.msra.mxu0 0.0
    %684 = vmatprep.subr.mxu0 0.0
    %685 = vmatpush2.msra.mxu0 0.0
    %686 = vmatprep.subr.mxu0 0.0
    %687 = vmatpush2.msra.mxu0 0.0
    %688 = vmatprep.subr.mxu0 0.0
    %689 = vmatpush2.msra.mxu0 0.0
    %690 = vmatprep.subr.mxu0 0.0
    %691 = vmatpush2.msra.mxu0 0.0
    %692 = vmatprep.subr.mxu0 0.0
    %693 = vmatpush2.msra.mxu0 0.0
    %694 = vmatprep.subr.mxu0 0.0
    %695 = vmatpush2.msra.mxu0 0.0
    %696 = vmatprep.subr.mxu0 0.0
    %697 = vmatpush2.msra.mxu0 0.0
    %698 = vmatprep.subr.mxu0 0.0
    %699 = vmatpush2.msra.mxu0 0.0
    %700 = vmatprep.subr.mxu0 0.0
    %701 = vmatpush2.msra.mxu0 0.0
    %702 = vmatprep.subr.mxu0 0.0
    %703 = vmatpush2.msra.mxu0 0.0
    %704 = vmatprep.subr.mxu0 0.0
    %705 = vmatpush2.msra.mxu0 0.0
    %706 = vmatprep.mubr.f32.mxu0 0.0
    %707 = vmatmul.mubr.f32.gmra.mxu0 %v637
    %v708 = vpop.f32.mrf.mxu0
    %v709 = vadd.f32 %v633, %v708
    %v710 = vpop.f32.mrf.mxu0
    %711 = vmatprep.mubr.f32.mxu0 0.0
    %712 = vmatmul.mubr.f32.gmra.mxu0 %v640
    %v713 = vpop.f32.mrf.mxu0
    %v714 = vadd.f32 %v633, %v713
    %v715 = vpop.f32.mrf.mxu0
    %716 = vdwg.mxu0
    %717 = vst.msk [vmem:[#allocation14] sm:$0xff] %vm406, %v709
    %718 = vst.msk [vmem:[#allocation14 + $0x8] sm:$0xff] %vm406, %v714
    %v719 = vld [vmem:[%s11] sm:$0xff]
    %v720 = vld [vmem:[%s11 + $0x8] sm:$0xff]
    %v721 = vld [vmem:[%s11 + $0x10] sm:$0xff]
    %v722 = vld [vmem:[%s11 + $0x18] sm:$0xff]
    %v723 = vld [vmem:[%s13] sm:$0xff]
    %v724 = vld [vmem:[%s13 + $0x8] sm:$0xff]
    %v725 = vld [vmem:[%s13 + $0x10] sm:$0xff]
    %v726 = vld [vmem:[%s13 + $0x18] sm:$0xff]
    %v727 = vld [vmem:[#allocation10] sm:$0x1]
    %v729 = vlaneseq
    %v730 = vshrl.u32 %v729, 7
    %v731 = vsub.s32 0, %v730
    %v732 = vrot.slane %v727, %v731
    %v735 = vsel %vm406, %v719, 0
    %v738 = vsel %vm406, %v720, 0
    %v741 = vsel %vm406, %v721, 0
    %v744 = vsel %vm406, %v722, 0
    %746 = vmatprep.subr.mxu0 0.0
    %747 = vmatpush1.msra.mxu0 0.0
    %748 = vmatprep.subr.mxu0 0.0
    %749 = vmatpush1.msra.mxu0 0.0
    %750 = vmatprep.subr.mxu0 0.0
    %751 = vmatpush1.msra.mxu0 0.0
    %752 = vmatprep.subr.mxu0 0.0
    %753 = vmatpush1.msra.mxu0 0.0
    %754 = vmatprep.subr.mxu0 0.0
    %755 = vmatpush1.msra.mxu0 0.0
    %756 = vmatprep.subr.mxu0 0.0
    %757 = vmatpush1.msra.mxu0 0.0
    %758 = vmatprep.subr.mxu0 0.0
    %759 = vmatpush1.msra.mxu0 0.0
    %760 = vmatprep.subr.mxu0 0.0
    %761 = vmatpush1.msra.mxu0 0.0
    %762 = vmatprep.subr.mxu0 0.0
    %763 = vmatpush1.msra.mxu0 0.0
    %764 = vmatprep.subr.mxu0 0.0
    %765 = vmatpush1.msra.mxu0 0.0
    %766 = vmatprep.subr.mxu0 0.0
    %767 = vmatpush1.msra.mxu0 0.0
    %768 = vmatprep.subr.mxu0 0.0
    %769 = vmatpush1.msra.mxu0 0.0
    %770 = vmatprep.subr.mxu0 0.0
    %771 = vmatpush1.msra.mxu0 %v726
    %772 = vmatprep.subr.mxu0 0.0
    %773 = vmatpush1.msra.mxu0 %v725
    %774 = vmatprep.subr.mxu0 0.0
    %775 = vmatpush1.msra.mxu0 %v724
    %776 = vmatprep.subr.mxu0 0.0
    %777 = vmatpush1.msra.mxu0 %v723
    %778 = vmatprep.subr.mxu0 0.0
    %779 = vmatpush2.msra.mxu0 0.0
    %780 = vmatprep.subr.mxu0 0.0
    %781 = vmatpush2.msra.mxu0 0.0
    %782 = vmatprep.subr.mxu0 0.0
    %783 = vmatpush2.msra.mxu0 0.0
    %784 = vmatprep.subr.mxu0 0.0
    %785 = vmatpush2.msra.mxu0 0.0
    %786 = vmatprep.subr.mxu0 0.0
    %787 = vmatpush2.msra.mxu0 0.0
    %788 = vmatprep.subr.mxu0 0.0
    %789 = vmatpush2.msra.mxu0 0.0
    %790 = vmatprep.subr.mxu0 0.0
    %791 = vmatpush2.msra.mxu0 0.0
    %792 = vmatprep.subr.mxu0 0.0
    %793 = vmatpush2.msra.mxu0 0.0
    %794 = vmatprep.subr.mxu0 0.0
    %795 = vmatpush2.msra.mxu0 0.0
    %796 = vmatprep.subr.mxu0 0.0
    %797 = vmatpush2.msra.mxu0 0.0
    %798 = vmatprep.subr.mxu0 0.0
    %799 = vmatpush2.msra.mxu0 0.0
    %800 = vmatprep.subr.mxu0 0.0
    %801 = vmatpush2.msra.mxu0 0.0
    %802 = vmatprep.subr.mxu0 0.0
    %803 = vmatpush2.msra.mxu0 0.0
    %804 = vmatprep.subr.mxu0 0.0
    %805 = vmatpush2.msra.mxu0 0.0
    %806 = vmatprep.subr.mxu0 0.0
    %807 = vmatpush2.msra.mxu0 0.0
    %808 = vmatprep.subr.mxu0 0.0
    %809 = vmatpush2.msra.mxu0 0.0
    %810 = vmatprep.mubr.f32.mxu0 0.0
    %811 = vmatmul.mubr.f32.gmra.mxu0 %v735
    %v812 = vpop.f32.mrf.mxu0
    %v813 = vadd.f32 %v732, %v812
    %v814 = vpop.f32.mrf.mxu0
    %815 = vmatprep.mubr.f32.mxu0 0.0
    %816 = vmatmul.mubr.f32.gmra.mxu0 %v738
    %v817 = vpop.f32.mrf.mxu0
    %v818 = vadd.f32 %v732, %v817
    %v819 = vpop.f32.mrf.mxu0
    %820 = vmatprep.mubr.f32.mxu0 0.0
    %821 = vmatmul.mubr.f32.gmra.mxu0 %v741
    %v822 = vpop.f32.mrf.mxu0
    %v823 = vadd.f32 %v732, %v822
    %v824 = vpop.f32.mrf.mxu0
    %825 = vmatprep.mubr.f32.mxu0 0.0
    %826 = vmatmul.mubr.f32.gmra.mxu0 %v744
    %v827 = vpop.f32.mrf.mxu0
    %v828 = vadd.f32 %v732, %v827
    %v829 = vpop.f32.mrf.mxu0
    %830 = vdwg.mxu0
    %v831 = vmax.f32 %v813, 0.0
    %v832 = vmax.f32 %v818, 0.0
    %v833 = vmax.f32 %v823, 0.0
    %v834 = vmax.f32 %v828, 0.0
    %v835 = vld [vmem:[%s15] sm:$0xff]
    %v836 = vld [vmem:[%s15 + $0x8] sm:$0xff]
    %v837 = vld [vmem:[%s15 + $0x10] sm:$0xff]
    %v838 = vld [vmem:[%s15 + $0x18] sm:$0xff]
    %v839 = vld [vmem:[#allocation11] sm:$0x1]
    %v841 = vlaneseq
    %v842 = vshrl.u32 %v841, 7
    %v843 = vsub.s32 0, %v842
    %v844 = vrot.slane %v839, %v843
    %v847 = vsel %vm406, %v831, 0
    %v850 = vsel %vm406, %v832, 0
    %v853 = vsel %vm406, %v833, 0
    %v856 = vsel %vm406, %v834, 0
    %858 = vmatprep.subr.mxu0 0.0
    %859 = vmatpush1.msra.mxu0 0.0
    %860 = vmatprep.subr.mxu0 0.0
    %861 = vmatpush1.msra.mxu0 0.0
    %862 = vmatprep.subr.mxu0 0.0
    %863 = vmatpush1.msra.mxu0 0.0
    %864 = vmatprep.subr.mxu0 0.0
    %865 = vmatpush1.msra.mxu0 0.0
    %866 = vmatprep.subr.mxu0 0.0
    %867 = vmatpush1.msra.mxu0 0.0
    %868 = vmatprep.subr.mxu0 0.0
    %869 = vmatpush1.msra.mxu0 0.0
    %870 = vmatprep.subr.mxu0 0.0
    %871 = vmatpush1.msra.mxu0 0.0
    %872 = vmatprep.subr.mxu0 0.0
    %873 = vmatpush1.msra.mxu0 0.0
    %874 = vmatprep.subr.mxu0 0.0
    %875 = vmatpush1.msra.mxu0 0.0
    %876 = vmatprep.subr.mxu0 0.0
    %877 = vmatpush1.msra.mxu0 0.0
    %878 = vmatprep.subr.mxu0 0.0
    %879 = vmatpush1.msra.mxu0 0.0
    %880 = vmatprep.subr.mxu0 0.0
    %881 = vmatpush1.msra.mxu0 0.0
    %882 = vmatprep.subr.mxu0 0.0
    %883 = vmatpush1.msra.mxu0 %v838
    %884 = vmatprep.subr.mxu0 0.0
    %885 = vmatpush1.msra.mxu0 %v837
    %886 = vmatprep.subr.mxu0 0.0
    %887 = vmatpush1.msra.mxu0 %v836
    %888 = vmatprep.subr.mxu0 0.0
    %889 = vmatpush1.msra.mxu0 %v835
    %890 = vmatprep.subr.mxu0 0.0
    %891 = vmatpush2.msra.mxu0 0.0
    %892 = vmatprep.subr.mxu0 0.0
    %893 = vmatpush2.msra.mxu0 0.0
    %894 = vmatprep.subr.mxu0 0.0
    %895 = vmatpush2.msra.mxu0 0.0
    %896 = vmatprep.subr.mxu0 0.0
    %897 = vmatpush2.msra.mxu0 0.0
    %898 = vmatprep.subr.mxu0 0.0
    %899 = vmatpush2.msra.mxu0 0.0
    %900 = vmatprep.subr.mxu0 0.0
    %901 = vmatpush2.msra.mxu0 0.0
    %902 = vmatprep.subr.mxu0 0.0
    %903 = vmatpush2.msra.mxu0 0.0
    %904 = vmatprep.subr.mxu0 0.0
    %905 = vmatpush2.msra.mxu0 0.0
    %906 = vmatprep.subr.mxu0 0.0
    %907 = vmatpush2.msra.mxu0 0.0
    %908 = vmatprep.subr.mxu0 0.0
    %909 = vmatpush2.msra.mxu0 0.0
    %910 = vmatprep.subr.mxu0 0.0
    %911 = vmatpush2.msra.mxu0 0.0
    %912 = vmatprep.subr.mxu0 0.0
    %913 = vmatpush2.msra.mxu0 0.0
    %914 = vmatprep.subr.mxu0 0.0
    %915 = vmatpush2.msra.mxu0 0.0
    %916 = vmatprep.subr.mxu0 0.0
    %917 = vmatpush2.msra.mxu0 0.0
    %918 = vmatprep.subr.mxu0 0.0
    %919 = vmatpush2.msra.mxu0 0.0
    %920 = vmatprep.subr.mxu0 0.0
    %921 = vmatpush2.msra.mxu0 0.0
    %922 = vmatprep.mubr.f32.mxu0 0.0
    %923 = vmatmul.mubr.f32.gmra.mxu0 %v847
    %v924 = vpop.f32.mrf.mxu0
    %v925 = vadd.f32 %v844, %v924
    %v926 = vpop.f32.mrf.mxu0
    %927 = vmatprep.mubr.f32.mxu0 0.0
    %928 = vmatmul.mubr.f32.gmra.mxu0 %v850
    %v929 = vpop.f32.mrf.mxu0
    %v930 = vadd.f32 %v844, %v929
    %v931 = vpop.f32.mrf.mxu0
    %932 = vmatprep.mubr.f32.mxu0 0.0
    %933 = vmatmul.mubr.f32.gmra.mxu0 %v853
    %v934 = vpop.f32.mrf.mxu0
    %v935 = vadd.f32 %v844, %v934
    %v936 = vpop.f32.mrf.mxu0
    %937 = vmatprep.mubr.f32.mxu0 0.0
    %938 = vmatmul.mubr.f32.gmra.mxu0 %v856
    %v939 = vpop.f32.mrf.mxu0
    %v940 = vadd.f32 %v844, %v939
    %v941 = vpop.f32.mrf.mxu0
    %942 = vdwg.mxu0
    %v943 = vmax.f32 %v925, 0.0
    %v944 = vmax.f32 %v930, 0.0
    %v945 = vmax.f32 %v935, 0.0
    %v946 = vmax.f32 %v940, 0.0
    %v947 = vld [vmem:[%s17] sm:$0xff]
    %v948 = vld [vmem:[%s17 + $0x8] sm:$0xff]
    %v949 = vld [vmem:[%s17 + $0x10] sm:$0xff]
    %v950 = vld [vmem:[%s17 + $0x18] sm:$0xff]
    %v951 = vld [vmem:[#allocation13] sm:$0x1]
    %v953 = vlaneseq
    %v954 = vshrl.u32 %v953, 7
    %v955 = vsub.s32 0, %v954
    %v956 = vrot.slane %v951, %v955
    %v959 = vsel %vm406, %v943, 0
    %v962 = vsel %vm406, %v944, 0
    %v965 = vsel %vm406, %v945, 0
    %v968 = vsel %vm406, %v946, 0
    %970 = vmatprep.subr.mxu0 0.0
    %971 = vmatpush1.msra.mxu0 0.0
    %972 = vmatprep.subr.mxu0 0.0
    %973 = vmatpush1.msra.mxu0 0.0
    %974 = vmatprep.subr.mxu0 0.0
    %975 = vmatpush1.msra.mxu0 0.0
    %976 = vmatprep.subr.mxu0 0.0
    %977 = vmatpush1.msra.mxu0 0.0
    %978 = vmatprep.subr.mxu0 0.0
    %979 = vmatpush1.msra.mxu0 0.0
    %980 = vmatprep.subr.mxu0 0.0
    %981 = vmatpush1.msra.mxu0 0.0
    %982 = vmatprep.subr.mxu0 0.0
    %983 = vmatpush1.msra.mxu0 0.0
    %984 = vmatprep.subr.mxu0 0.0
    %985 = vmatpush1.msra.mxu0 0.0
    %986 = vmatprep.subr.mxu0 0.0
    %987 = vmatpush1.msra.mxu0 0.0
    %988 = vmatprep.subr.mxu0 0.0
    %989 = vmatpush1.msra.mxu0 0.0
    %990 = vmatprep.subr.mxu0 0.0
    %991 = vmatpush1.msra.mxu0 0.0
    %992 = vmatprep.subr.mxu0 0.0
    %993 = vmatpush1.msra.mxu0 0.0
    %994 = vmatprep.subr.mxu0 0.0
    %995 = vmatpush1.msra.mxu0 %v950
    %996 = vmatprep.subr.mxu0 0.0
    %997 = vmatpush1.msra.mxu0 %v949
    %998 = vmatprep.subr.mxu0 0.0
    %999 = vmatpush1.msra.mxu0 %v948
    %1000 = vmatprep.subr.mxu0 0.0
    %1001 = vmatpush1.msra.mxu0 %v947
    %1002 = vmatprep.subr.mxu0 0.0
    %1003 = vmatpush2.msra.mxu0 0.0
    %1004 = vmatprep.subr.mxu0 0.0
    %1005 = vmatpush2.msra.mxu0 0.0
    %1006 = vmatprep.subr.mxu0 0.0
    %1007 = vmatpush2.msra.mxu0 0.0
    %1008 = vmatprep.subr.mxu0 0.0
    %1009 = vmatpush2.msra.mxu0 0.0
    %1010 = vmatprep.subr.mxu0 0.0
    %1011 = vmatpush2.msra.mxu0 0.0
    %1012 = vmatprep.subr.mxu0 0.0
    %1013 = vmatpush2.msra.mxu0 0.0
    %1014 = vmatprep.subr.mxu0 0.0
    %1015 = vmatpush2.msra.mxu0 0.0
    %1016 = vmatprep.subr.mxu0 0.0
    %1017 = vmatpush2.msra.mxu0 0.0
    %1018 = vmatprep.subr.mxu0 0.0
    %1019 = vmatpush2.msra.mxu0 0.0
    %1020 = vmatprep.subr.mxu0 0.0
    %1021 = vmatpush2.msra.mxu0 0.0
    %1022 = vmatprep.subr.mxu0 0.0
    %1023 = vmatpush2.msra.mxu0 0.0
    %1024 = vmatprep.subr.mxu0 0.0
    %1025 = vmatpush2.msra.mxu0 0.0
    %1026 = vmatprep.subr.mxu0 0.0
    %1027 = vmatpush2.msra.mxu0 0.0
    %1028 = vmatprep.subr.mxu0 0.0
    %1029 = vmatpush2.msra.mxu0 0.0
    %1030 = vmatprep.subr.mxu0 0.0
    %1031 = vmatpush2.msra.mxu0 0.0
    %1032 = vmatprep.subr.mxu0 0.0
    %1033 = vmatpush2.msra.mxu0 0.0
    %1034 = vmatprep.mubr.f32.mxu0 0.0
    %1035 = vmatmul.mubr.f32.gmra.mxu0 %v959
    %v1036 = vpop.f32.mrf.mxu0
    %v1037 = vadd.f32 %v956, %v1036
    %v1038 = vpop.f32.mrf.mxu0
    %1039 = vmatprep.mubr.f32.mxu0 0.0
    %1040 = vmatmul.mubr.f32.gmra.mxu0 %v962
    %v1041 = vpop.f32.mrf.mxu0
    %v1042 = vadd.f32 %v956, %v1041
    %v1043 = vpop.f32.mrf.mxu0
    %1044 = vmatprep.mubr.f32.mxu0 0.0
    %1045 = vmatmul.mubr.f32.gmra.mxu0 %v965
    %v1046 = vpop.f32.mrf.mxu0
    %v1047 = vadd.f32 %v956, %v1046
    %v1048 = vpop.f32.mrf.mxu0
    %1049 = vmatprep.mubr.f32.mxu0 0.0
    %1050 = vmatmul.mubr.f32.gmra.mxu0 %v968
    %v1051 = vpop.f32.mrf.mxu0
    %v1052 = vadd.f32 %v956, %v1051
    %v1053 = vpop.f32.mrf.mxu0
    %1054 = vdwg.mxu0
    %v1055 = vld [vmem:[%s12] sm:$0xff]
    %v1056 = vld [vmem:[%s12 + $0x8] sm:$0xff]
    %v1057 = vld [vmem:[%s12 + $0x10] sm:$0xff]
    %v1058 = vld [vmem:[%s12 + $0x18] sm:$0xff]
    %v1059 = vmax.f32 %v1055, 0.0
    %v1060 = vmax.f32 %v1056, 0.0
    %v1061 = vmax.f32 %v1057, 0.0
    %v1062 = vmax.f32 %v1058, 0.0
    %v1063 = vmin.f32 %v1059, 1.0
    %v1064 = vmin.f32 %v1060, 1.0
    %v1065 = vmin.f32 %v1061, 1.0
    %v1066 = vmin.f32 %v1062, 1.0
    %v1067 = vmax.f32 %v1063, 0.001
    %v1068 = vmax.f32 %v1064, 0.001
    %v1069 = vmax.f32 %v1065, 0.001
    %v1070 = vmax.f32 %v1066, 0.001
    %v1071 = vsub.f32 1.0, %v1063
    %v1072 = vsub.f32 1.0, %v1064
    %v1073 = vsub.f32 1.0, %v1065
    %v1074 = vsub.f32 1.0, %v1066
    %v1075 = vmax.f32 %v1071, 0.001
    %v1076 = vmax.f32 %v1072, 0.001
    %v1077 = vmax.f32 %v1073, 0.001
    %v1078 = vmax.f32 %v1074, 0.001
    %v1079 = vrcp.pop %v1075
    %v1080 = vmul.f32 %v1067, %v1079
    %v1081 = vrcp.pop %v1076
    %v1082 = vmul.f32 %v1068, %v1081
    %v1083 = vrcp.pop %v1077
    %v1084 = vmul.f32 %v1069, %v1083
    %v1085 = vrcp.pop %v1078
    %v1086 = vmul.f32 %v1070, %v1085
    %v1087 = vlog2.pop %v1080
    %v1088 = vmul.f32 %v1087, 0.6931472
    %v1089 = vlog2.pop %v1082
    %v1090 = vmul.f32 %v1089, 0.6931472
    %v1091 = vlog2.pop %v1084
    %v1092 = vmul.f32 %v1091, 0.6931472
    %v1093 = vlog2.pop %v1086
    %v1094 = vmul.f32 %v1093, 0.6931472
    %v1095 = vadd.f32 %v1037, %v1088
    %v1096 = vadd.f32 %v1042, %v1090
    %v1097 = vadd.f32 %v1047, %v1092
    %v1098 = vadd.f32 %v1052, %v1094
    %v1099 = vxor.u32 %v1095, 2147483648
    %v1100 = vxor.u32 %v1096, 2147483648
    %v1101 = vxor.u32 %v1097, 2147483648
    %v1102 = vxor.u32 %v1098, 2147483648
    %v1103 = vmul.f32 %v1099, 1.442695
    %v1104 = vpow.pop %v1103
    %v1105 = vmul.f32 %v1100, 1.442695
    %v1106 = vpow.pop %v1105
    %v1107 = vmul.f32 %v1101, 1.442695
    %v1108 = vpow.pop %v1107
    %v1109 = vmul.f32 %v1102, 1.442695
    %v1110 = vpow.pop %v1109
    %v1111 = vadd.f32 %v1104, 1.0
    %v1112 = vadd.f32 %v1106, 1.0
    %v1113 = vadd.f32 %v1108, 1.0
    %v1114 = vadd.f32 %v1110, 1.0
    %v1115 = vrcp.pop %v1111
    %v1116 = vmul.f32 1.0, %v1115
    %v1117 = vrcp.pop %v1112
    %v1118 = vmul.f32 1.0, %v1117
    %v1119 = vrcp.pop %v1113
    %v1120 = vmul.f32 1.0, %v1119
    %v1121 = vrcp.pop %v1114
    %v1122 = vmul.f32 1.0, %v1121
    %vm1123 = vcmask 31744
    %1124 = vst.msk [vmem:[%s23] sm:$0xff] %vm1123, %v1116
    %1125 = vst.msk [vmem:[%s23 + $0x8] sm:$0xff] %vm1123, %v1118
    %1126 = vst.msk [vmem:[%s23 + $0x10] sm:$0xff] %vm1123, %v1120
    %1127 = vst.msk [vmem:[%s23 + $0x18] sm:$0xff] %vm1123, %v1122
    %v1129 = vsel %vm406, %v709, 0
    %v1132 = vsel %vm406, %v714, 0
    %1134 = vmatprep.subr.mxu0 0.0
    %1135 = vmatpush1.xpose.msra.mxu0 0.0
    %1136 = vmatprep.subr.mxu0 0.0
    %1137 = vmatpush1.xpose.msra.mxu0 0.0
    %1138 = vmatprep.subr.mxu0 0.0
    %1139 = vmatpush1.xpose.msra.mxu0 0.0
    %1140 = vmatprep.subr.mxu0 0.0
    %1141 = vmatpush1.xpose.msra.mxu0 0.0
    %1142 = vmatprep.subr.mxu0 0.0
    %1143 = vmatpush1.xpose.msra.mxu0 0.0
    %1144 = vmatprep.subr.mxu0 0.0
    %1145 = vmatpush1.xpose.msra.mxu0 0.0
    %1146 = vmatprep.subr.mxu0 0.0
    %1147 = vmatpush1.xpose.msra.mxu0 0.0
    %1148 = vmatprep.subr.mxu0 0.0
    %1149 = vmatpush1.xpose.msra.mxu0 0.0
    %1150 = vmatprep.subr.mxu0 0.0
    %1151 = vmatpush1.xpose.msra.mxu0 0.0
    %1152 = vmatprep.subr.mxu0 0.0
    %1153 = vmatpush1.xpose.msra.mxu0 0.0
    %1154 = vmatprep.subr.mxu0 0.0
    %1155 = vmatpush1.xpose.msra.mxu0 0.0
    %1156 = vmatprep.subr.mxu0 0.0
    %1157 = vmatpush1.xpose.msra.mxu0 0.0
    %1158 = vmatprep.subr.mxu0 0.0
    %1159 = vmatpush1.xpose.msra.mxu0 0.0
    %1160 = vmatprep.subr.mxu0 0.0
    %1161 = vmatpush1.xpose.msra.mxu0 0.0
    %1162 = vmatprep.subr.mxu0 0.0
    %1163 = vmatpush1.xpose.msra.mxu0 %v1132
    %1164 = vmatprep.subr.mxu0 0.0
    %1165 = vmatpush1.xpose.msra.mxu0 %v1129
    %1166 = vmatprep.subr.mxu0 0.0
    %1167 = vmatpush2.xpose.msra.mxu0 0.0
    %1168 = vmatprep.subr.mxu0 0.0
    %1169 = vmatpush2.xpose.msra.mxu0 0.0
    %1170 = vmatprep.subr.mxu0 0.0
    %1171 = vmatpush2.xpose.msra.mxu0 0.0
    %1172 = vmatprep.subr.mxu0 0.0
    %1173 = vmatpush2.xpose.msra.mxu0 0.0
    %1174 = vmatprep.subr.mxu0 0.0
    %1175 = vmatpush2.xpose.msra.mxu0 0.0
    %1176 = vmatprep.subr.mxu0 0.0
    %1177 = vmatpush2.xpose.msra.mxu0 0.0
    %1178 = vmatprep.subr.mxu0 0.0
    %1179 = vmatpush2.xpose.msra.mxu0 0.0
    %1180 = vmatprep.subr.mxu0 0.0
    %1181 = vmatpush2.xpose.msra.mxu0 0.0
    %1182 = vmatprep.subr.mxu0 0.0
    %1183 = vmatpush2.xpose.msra.mxu0 0.0
    %1184 = vmatprep.subr.mxu0 0.0
    %1185 = vmatpush2.xpose.msra.mxu0 0.0
    %1186 = vmatprep.subr.mxu0 0.0
    %1187 = vmatpush2.xpose.msra.mxu0 0.0
    %1188 = vmatprep.subr.mxu0 0.0
    %1189 = vmatpush2.xpose.msra.mxu0 0.0
    %1190 = vmatprep.subr.mxu0 0.0
    %1191 = vmatpush2.xpose.msra.mxu0 0.0
    %1192 = vmatprep.subr.mxu0 0.0
    %1193 = vmatpush2.xpose.msra.mxu0 0.0
    %1194 = vmatprep.subr.mxu0 0.0
    %1195 = vmatpush2.xpose.msra.mxu0 0.0
    %1196 = vmatprep.subr.mxu0 0.0
    %1197 = vmatpush2.xpose.msra.mxu0 0.0
    %1198 = vmatprep.mubr.f32.mxu0 0.0
    %1199 = vmatmul.mubr.f32.gmra.mxu0 %v735
    %v1200 = vpop.f32.mrf.mxu0
    %v1201 = vadd.f32 0.0, %v1200
    %v1202 = vpop.f32.mrf.mxu0
    %1203 = vmatprep.mubr.f32.mxu0 0.0
    %1204 = vmatmul.mubr.f32.gmra.mxu0 %v738
    %v1205 = vpop.f32.mrf.mxu0
    %v1206 = vadd.f32 0.0, %v1205
    %v1207 = vpop.f32.mrf.mxu0
    %1208 = vmatprep.mubr.f32.mxu0 0.0
    %1209 = vmatmul.mubr.f32.gmra.mxu0 %v741
    %v1210 = vpop.f32.mrf.mxu0
    %v1211 = vadd.f32 0.0, %v1210
    %v1212 = vpop.f32.mrf.mxu0
    %1213 = vmatprep.mubr.f32.mxu0 0.0
    %1214 = vmatmul.mubr.f32.gmra.mxu0 %v744
    %v1215 = vpop.f32.mrf.mxu0
    %v1216 = vadd.f32 0.0, %v1215
    %v1217 = vpop.f32.mrf.mxu0
    %1218 = vdwg.mxu0
    %v1219 = vld [vmem:[%s19] sm:$0x3]
    %1220 = vst.msk [vmem:[%s24] sm:$0xff] %vm635, -inf
    %1221 = vst.msk [vmem:[%s24 + $0x8] sm:$0xff] %vm635, -inf
    %1222 = vst.msk [vmem:[%s24 + $0x10] sm:$0xff] %vm635, -inf
    %1223 = vst.msk [vmem:[%s24 + $0x18] sm:$0xff] %vm635, -inf
    %vm1224 = vcmp.gt.f32.partialorder %v1219, 0.5
    %v1225 = vsel %vm1224, 1, 0
    %v1226 = vlaneseq
    %v1227 = vshrl.u32 %v1226, 7
    %v1228 = vsub.s32 0, %v1227
    %v1229 = vrot.slane %v1225, %v1228
    %vm1230 = vcmp.eq.s32.totalorder %v1229, 1
    %v1231 = vsel %vm1230, %v1201, -inf
    %1232 = vst.msk [vmem:[%s24] sm:$0xff] %vm212, %v1231
    %v1233 = vlaneseq
    %v1234 = vshrl.u32 %v1233, 7
    %v1235 = vsub.s32 1, %v1234
    %v1236 = vrot.slane %v1225, %v1235
    %vm1237 = vcmp.eq.s32.totalorder %v1236, 1
    %1239 = vrot.lane.b32.xlu0 %v1206, 120
    %v1240 = vpop.permute.xlu0 %1239
    %v1242 = vsel %vm1237, %v1240, -inf
    %1243 = vst.msk [vmem:[%s24 + $0x8] sm:$0xff] %vm212, %v1242
    %v1244 = vsel %vm1230, %v1211, -inf
    %1245 = vst.msk [vmem:[%s24 + $0x10] sm:$0xff] %vm212, %v1244
    %1247 = vrot.lane.b32.xlu0 %v1216, 120
    %v1248 = vpop.permute.xlu0 %1247
    %v1250 = vsel %vm1237, %v1248, -inf
    %1251 = vst.msk [vmem:[%s24 + $0x18] sm:$0xff] %vm212, %v1250
    // Predicated region
    $region110: #{grounding_dino_forward.1} parent=1 // pred_check
      _
    $region111: #{grounding_dino_forward.1} parent=1 // pred_check_branch
      %1253 = sbr.rel (0) target = $region113
    $region112: #{grounding_dino_forward.1} parent=1 // pred_region
      _
    $region113: #{grounding_dino_forward.1} parent=1 // pred_fallthru
      _
    // Predicated region
    $region114: #{grounding_dino_forward.1} parent=1 // pred_check
      _
    $region115: #{grounding_dino_forward.1} parent=1 // pred_check_branch
      %1255 = sbr.rel (0) target = $region117
    $region116: #{grounding_dino_forward.1} parent=1 // pred_region
      _
    $region117: #{grounding_dino_forward.1} parent=1 // pred_fallthru
      _
    // Predicated region
    $region118: #{grounding_dino_forward.1} parent=1 // pred_check
      _
    $region119: #{grounding_dino_forward.1} parent=1 // pred_check_branch
      %1257 = sbr.rel (0) target = $region121
    $region120: #{grounding_dino_forward.1} parent=1 // pred_region
      %s1259 = ssub.s32 256, 256
      %1260 = vsyncadd [#allocation4], %s1259
      %s1261 = sshll.u32 [#allocation14], 4
      %s1262 = int_to_ptr.vmem [resolvable:$true] %s1261
      %1267 = dma.vmem_to_hbm [thread:$0]  %s1262, 256, %s22, [#allocation4], 128, 128, 8
    $region121: #{grounding_dino_forward.1} parent=1 // pred_fallthru
      _
    // Predicated region
    $region122: #{grounding_dino_forward.1} parent=1 // pred_check
      _
    $region123: #{grounding_dino_forward.1} parent=1 // pred_check_branch
      %1269 = sbr.rel (0) target = $region125
    $region124: #{grounding_dino_forward.1} parent=1 // pred_region
      _
    $region125: #{grounding_dino_forward.1} parent=1 // pred_fallthru
      _
    // Predicated region
    $region126: #{grounding_dino_forward.1} parent=1 // pred_check
      _
    $region127: #{grounding_dino_forward.1} parent=1 // pred_check_branch
      %1271 = sbr.rel (0) target = $region129
    $region128: #{grounding_dino_forward.1} parent=1 // pred_region
      _
    $region129: #{grounding_dino_forward.1} parent=1 // pred_fallthru
      _
    // Predicated region
    $region130: #{grounding_dino_forward.1} parent=1 // pred_check
      _
    $region131: #{grounding_dino_forward.1} parent=1 // pred_check_branch
      %1273 = sbr.rel (0) target = $region133
    $region132: #{grounding_dino_forward.1} parent=1 // pred_region
      _
    $region133: #{grounding_dino_forward.1} parent=1 // pred_fallthru
      _
    // Predicated region
    $region134: #{grounding_dino_forward.1} parent=1 // pred_check
      _
    $region135: #{grounding_dino_forward.1} parent=1 // pred_check_branch
      %1275 = sbr.rel (0) target = $region137
    $region136: #{grounding_dino_forward.1} parent=1 // pred_region
      _
    $region137: #{grounding_dino_forward.1} parent=1 // pred_fallthru
      _
    // Predicated region
    $region138: #{grounding_dino_forward.1} parent=1 // pred_check
      _
    $region139: #{grounding_dino_forward.1} parent=1 // pred_check_branch
      %1277 = sbr.rel (0) target = $region141
    $region140: #{grounding_dino_forward.1} parent=1 // pred_region
      %1278 = dma.done [#allocation4], 256
    $region141: #{grounding_dino_forward.1} parent=1 // pred_fallthru
      _
    // Predicated region
    $region142: #{grounding_dino_forward.1} parent=1 // pred_check
      _
    $region143: #{grounding_dino_forward.1} parent=1 // pred_check_branch
      %1280 = sbr.rel (0) target = $region145
    $region144: #{grounding_dino_forward.1} parent=1 // pred_region
      _
    $region145: #{grounding_dino_forward.1} parent=1 // pred_fallthru
      _
    // Predicated region
    $region146: #{grounding_dino_forward.1} parent=1 // pred_check
      _
    $region147: #{grounding_dino_forward.1} parent=1 // pred_check_branch
      %1282 = sbr.rel (0) target = $region149
    $region148: #{grounding_dino_forward.1} parent=1 // pred_region
      _
    $region149: #{grounding_dino_forward.1} parent=1 // pred_fallthru
      _
    %1283 = vsyncpa [#allocation3], 1
    %1284 = vsyncpa [#allocation6], 1
    %1285 = vsyncpa [#allocation9], 1
    %1286 = vsyncpa [#allocation12], 1
    %1287 = vsyncpa [#allocation4], 1

</llo_original>
